<compile_context>
chip_gen: v5e
topology: v5e:2x2
jax: 0.10.0
libtpu: 0.0.40
codegen_flags: <defaults>
</compile_context>

<pallas_src>
import math

import jax
import jax.numpy as jnp
import numpy as np
from jax import lax
from jax.experimental import pallas as pl
from jax.experimental.pallas import tpu as pltpu


# TODO(synk): flip to jnp.bfloat16 on v6e/v7x for ~2x MXU throughput (f32 accumulation kept).
MXU_IN_DTYPE = jnp.float32


def _mosaic_params(n_parallel, block_bytes):
    # Explicit scoped-VMEM limit: double-buffered blocks + headroom for in-kernel
    # temporaries / spills, capped so we stay well under v7x's 64 MiB physical VMEM.
    limit = min(int(2 * block_bytes) + (8 << 20), 48 << 20)
    return pltpu.CompilerParams(
        dimension_semantics=("parallel",) * n_parallel,
        vmem_limit_bytes=limit)


# ----------------------------------------------------------------------------
# Pallas kernel 1: spherical-harmonics shading + envmap integration (lane-dense).
#   inputs  (per tile): wi (2, S, T)  [theta, phi],  env (3, S, T),  albedo (3, T)
#   outputs (per tile): forward (3, T),  f (9, 3, T)   [9 SH bands x 3 colors]
# ----------------------------------------------------------------------------
def _sh_shading_kernel(wi_ref, env_ref, alb_ref, fwd_ref, f_ref):
    S = wi_ref.shape[2]
    inv_s = 1.0 / float(S)

    theta = wi_ref[0, 0]                      # (S, T)
    phi = wi_ref[0, 1]                        # (S, T)
    alb = alb_ref[0]                          # (3, T)

    # forward = mean_S(albedo * env) = albedo * mean_S(env)   (albedo is S-independent)
    fwd_ref[0] = alb * jnp.mean(env_ref[0], axis=1)

    st = jnp.sin(theta)
    x = st * jnp.cos(phi)
    y = st * jnp.sin(phi)
    z = jnp.cos(theta)

    def smean(v):                             # (S, T) -> (1, T)
        return jnp.sum(v, axis=0, keepdims=True) * inv_s

    k00 = float(np.sqrt(1.0 / np.pi) / 2.0)
    k1 = float(np.sqrt(3.0 / (4.0 * np.pi)))
    k20 = float(np.sqrt(5.0 / (16.0 * np.pi)))
    k2a = float(np.sqrt(15.0 / np.pi) / 2.0)
    k2p1 = float(np.sqrt(15.0 / (4.0 * np.pi)))
    k2p2 = float(np.sqrt(15.0 / (16.0 * np.pi)))

    # band_k = mean_S(K_k(theta, phi) * albedo) = albedo * mean_S(K_k); each band written
    # straight into its own slot (no concatenate, no broadcast temporaries).
    f_ref[0, 0] = k00 * alb
    f_ref[0, 1] = (k1 * smean(y)) * alb
    f_ref[0, 2] = (k1 * smean(z)) * alb
    f_ref[0, 3] = (k1 * smean(x)) * alb
    f_ref[0, 4] = (k2a * smean(x * y)) * alb
    f_ref[0, 5] = (k2a * smean(y * z)) * alb
    f_ref[0, 6] = (k20 * smean(2.0 * z * z - x * x - y * y)) * alb
    f_ref[0, 7] = (k2p1 * smean(z * x)) * alb
    f_ref[0, 8] = (k2p2 * smean(x * x - y * y)) * alb


def sh_shading(wi, envmap, albedo_flat):
    """wi: (N,2,S,HW)  envmap: (N,3,S,HW)  albedo_flat: (N,3,HW)
    -> forward (N,3,HW), f (N,9,3,HW)."""
    N, _, S, HW = wi.shape
    # Lane-dense spatial tile (multiple of 128); whole image at small sizes, bounded tiles
    # at realistic sizes so the blocks fit v7x's smaller VMEM.
    t_hw = HW
    if HW > 4096:
        for cand in (4096, 2048, 1024, 512, 256, 128):
            if HW % cand == 0:
                t_hw = cand
                break
    n_t = HW // t_hw
    block_bytes = 4 * t_hw * (2 * S + 3 * S + 3 + 3 + 27)
    return pl.pallas_call(
        _sh_shading_kernel,
        out_shape=(jax.ShapeDtypeStruct((N, 3, HW), jnp.float32),
                   jax.ShapeDtypeStruct((N, 9, 3, HW), jnp.float32)),
        grid=(N, n_t),
        in_specs=[pl.BlockSpec((1, 2, S, t_hw), lambda n, t: (n, 0, 0, t)),
                  pl.BlockSpec((1, 3, S, t_hw), lambda n, t: (n, 0, 0, t)),
                  pl.BlockSpec((1, 3, t_hw), lambda n, t: (n, 0, t))],
        out_specs=(pl.BlockSpec((1, 3, t_hw), lambda n, t: (n, 0, t)),
                   pl.BlockSpec((1, 9, 3, t_hw), lambda n, t: (n, 0, 0, t))),
        compiler_params=_mosaic_params(2, block_bytes),
    )(wi, envmap, albedo_flat)


# ----------------------------------------------------------------------------
# Pallas kernel 2 (fused): basis-scale -> conv3x3(F->32)+ReLU -> conv3x3(32->27) -> band
# combine with f.  h1 / T stay in VMEM; output `final` is (3, H*W) lane-dense.
# ----------------------------------------------------------------------------
def _im2col_3x3(v):
    """v: (H, W, C) value.  Returns (H*W, 9*C) patches for a SAME 3x3 conv.
    Zero halo is built in-kernel (no wrapper-side jnp.pad HBM round trip)."""
    Hh, Ww, C = v.shape
    zrow = jnp.zeros((1, Ww, C), v.dtype)
    zcol = jnp.zeros((Hh, 1, C), v.dtype)
    taps = []
    for dy in (-1, 0, 1):                    # tap row ky = dy + 1
        if dy == -1:
            vy = jnp.concatenate([zrow, v[:Hh - 1]], axis=0)
        elif dy == 1:
            vy = jnp.concatenate([v[1:], zrow], axis=0)
        else:
            vy = v
        for dx in (-1, 0, 1):                # tap col kx = dx + 1
            if dx == -1:
                t = jnp.concatenate([zcol, vy[:, :Ww - 1]], axis=1)
            elif dx == 1:
                t = jnp.concatenate([vy[:, 1:], zcol], axis=1)
            else:
                t = vy
            taps.append(t.reshape(Hh * Ww, C))
    return jnp.concatenate(taps, axis=1)      # (HW, 9C)


def _unet_combine_kernel(nt_ref, scale_ref, f_ref, w1_ref, b1_ref, w2_ref, b2_ref, out_ref):
    # nt_ref: (1,H,W,F)  scale_ref: (1,1,F)  f_ref: (1,9,3,HW)
    # w1_ref: (9F,C1)  b1_ref: (1,C1)  w2_ref: (9*C1,C2)  b2_ref: (1,C2)  out_ref: (1,3,HW)
    H, W = nt_ref.shape[1], nt_ref.shape[2]
    C1 = w1_ref.shape[1]

    # per-batch SH-basis channel scaling fused in (saves an HBM round trip of nt)
    xin = nt_ref[0] * scale_ref[0]                                   # (H, W, F)

    # conv1: one im2col matmul, K = 9*F
    p1 = _im2col_3x3(xin).astype(MXU_IN_DTYPE)                       # (HW, 9F)
    h1 = jnp.dot(p1, w1_ref[...].astype(MXU_IN_DTYPE),
                 preferred_element_type=jnp.float32) + b1_ref[...]
    h1 = jnp.maximum(h1, 0.0)                                        # (HW, C1) -- VMEM only

    # conv2: one im2col matmul, K = 9*C1 (output channels padded 27 -> 32)
    p2 = _im2col_3x3(h1.reshape(H, W, C1)).astype(MXU_IN_DTYPE)      # (HW, 9*C1)
    t2 = jnp.dot(p2, w2_ref[...].astype(MXU_IN_DTYPE),
                 preferred_element_type=jnp.float32) + b2_ref[...]   # (HW, C2)

    # band combine fused in: final[c] = sum_b f[b, c] * T[3b + c].
    # Keep T channel-major so the output store is lane-dense (3, HW).
    tT = jnp.transpose(t2)                                           # (C2, HW)
    acc = f_ref[0, 0] * tT[0:3]
    for b in range(1, 9):
        acc = acc + f_ref[0, b] * tT[3 * b:3 * b + 3]
    out_ref[0] = acc


def unet_combine(nt_nhwc, scale, f, w1_mat, b1_row, w2_mat, b2_row):
    """nt_nhwc: (N,H,W,F)  scale: (N,1,F)  f: (N,9,3,HW)  -> final (N,3,HW)."""
    N, H, W, F = nt_nhwc.shape
    HW = H * W
    K1, C1 = w1_mat.shape
    K2, C2 = w2_mat.shape
    block_bytes = 4 * (H * W * F + F + 27 * HW + K1 * C1 + C1 + K2 * C2 + C2 + 3 * HW
                       + HW * (K1 + K2 + 2 * C2))  # include in-kernel patch/activation temps
    # TODO(synk): at production resolutions, add an H-tile grid axis (1-row halo per conv)
    #             and size tiles for v7x's 64 MiB VMEM.
    return pl.pallas_call(
        _unet_combine_kernel,
        out_shape=jax.ShapeDtypeStruct((N, 3, HW), jnp.float32),
        grid=(N,),
        in_specs=[pl.BlockSpec((1, H, W, F), lambda n: (n, 0, 0, 0)),
                  pl.BlockSpec((1, 1, F), lambda n: (n, 0, 0)),
                  pl.BlockSpec((1, 9, 3, HW), lambda n: (n, 0, 0, 0)),
                  pl.BlockSpec((K1, C1), lambda n: (0, 0)),
                  pl.BlockSpec((1, C1), lambda n: (0, 0)),
                  pl.BlockSpec((K2, C2), lambda n: (0, 0)),
                  pl.BlockSpec((1, C2), lambda n: (0, 0))],
        out_specs=pl.BlockSpec((1, 3, HW), lambda n: (n, 0, 0)),
        compiler_params=_mosaic_params(1, block_bytes),
    )(nt_nhwc, scale, f, w1_mat, b1_row, w2_mat, b2_row)


# ----------------------------------------------------------------------------
# Plain-JAX glue: texture sampling (gather), SH basis, parameter setup.
# ----------------------------------------------------------------------------
def _bilinear_coords(uv, Ht, Wt):
    xf = uv[..., 0] * (Wt - 1)
    yf = uv[..., 1] * (Ht - 1)
    x0 = jnp.clip(jnp.floor(xf).astype(jnp.int32), 0, Wt - 1)
    y0 = jnp.clip(jnp.floor(yf).astype(jnp.int32), 0, Ht - 1)
    x1 = jnp.clip(x0 + 1, 0, Wt - 1)
    y1 = jnp.clip(y0 + 1, 0, Ht - 1)
    wx = xf - x0.astype(xf.dtype)
    wy = yf - y0.astype(yf.dtype)
    return x0, x1, y0, y1, wx, wy


def bilinear_sample_nchw(tex, uv):
    """tex: (C,Ht,Wt); uv: (N,H,W,2) in [0,1] -> (N,C,H,W)."""
    C, Ht, Wt = tex.shape
    x0, x1, y0, y1, wx, wy = _bilinear_coords(uv, Ht, Wt)

    def g(yi, xi):
        return tex[:, yi, xi]                       # (C,N,H,W)

    out = (g(y0, x0) * ((1 - wx) * (1 - wy))[None]
           + g(y0, x1) * (wx * (1 - wy))[None]
           + g(y1, x0) * ((1 - wx) * wy)[None]
           + g(y1, x1) * (wx * wy)[None])
    return jnp.transpose(out, (1, 0, 2, 3))


def bilinear_sample_nhwc(tex, uv):
    """Same sampling, but emits NHWC directly (no full-tensor relayout of the result)."""
    C, Ht, Wt = tex.shape
    tex_hwc = jnp.transpose(tex, (1, 2, 0))          # (Ht,Wt,C) -- tiny one-off
    x0, x1, y0, y1, wx, wy = _bilinear_coords(uv, Ht, Wt)

    def g(yi, xi):
        return tex_hwc[yi, xi]                       # (N,H,W,C)

    return (g(y0, x0) * ((1 - wx) * (1 - wy))[..., None]
            + g(y0, x1) * (wx * (1 - wy))[..., None]
            + g(y1, x0) * ((1 - wx) * wy)[..., None]
            + g(y1, x1) * (wx * wy)[..., None])


def spherical_harmonics_basis(extrinsics):
    """extrinsics: (N, 3) -> (N, 9)."""
    c0 = 1.0 / (2.0 * math.sqrt(np.pi))
    c1 = math.sqrt(3.0) * c0
    c2 = math.sqrt(15.0) * c0
    c3 = math.sqrt(1.25) * c0
    s5 = math.sqrt(0.5)
    ex, ey, ez = extrinsics[:, 0], extrinsics[:, 1], extrinsics[:, 2]
    return jnp.stack([
        jnp.full_like(ex, c0),
        ey * c1 * s5,
        ez * c1,
        ex * c1 * (-s5),
        ex * ey * c2 * 0.5 * s5,
        ey * ez * c2 * s5,
        (3.0 * ez * ez - 1.0) * c3,
        ez * ex * c2 * (-s5),
        (ex * ex - ez * ez) * c2 * 0.5 * s5,
    ], axis=1)


def init_params(key, tex_h, tex_w, feature_num, hidden=32):
    ks = jax.random.split(key, 7)
    albedo_layers = [jax.random.uniform(ks[i], (1, 1, tex_h, tex_w), jnp.float32)
                     for i in range(3)]
    neural_tex = jax.random.uniform(ks[3], (feature_num, tex_h, tex_w), jnp.float32)
    w1 = 0.1 * jax.random.normal(ks[4], (3, 3, feature_num, hidden), jnp.float32)
    b1 = jnp.zeros((hidden,), jnp.float32)
    w2 = 0.1 * jax.random.normal(ks[5], (3, 3, hidden, 27), jnp.float32)
    b2 = jnp.zeros((27,), jnp.float32)
    return dict(albedo_layers=albedo_layers, neural_tex=neural_tex,
                w1=w1, b1=b1, w2=w2, b2=b2)


def pipeline_forward(wi, envmap, uv_map, extrinsics, params):
    """wi: (N,2,S,H,W)  envmap: (N,3,S,H,W)  uv_map: (N,H,W,2)  extrinsics: (N,3)."""
    N, _, S, H, W = wi.shape
    HW = H * W
    F = params["neural_tex"].shape[0]
    hidden = params["w1"].shape[-1]

    albedo_tex_full = jnp.concatenate(params["albedo_layers"], axis=1)   # (1,3,Ht,Wt)
    albedo = bilinear_sample_nchw(albedo_tex_full[0], uv_map)            # (N,3,H,W)
    nt_nhwc = bilinear_sample_nhwc(params["neural_tex"], uv_map)         # (N,H,W,F)

    # --- Pallas: SH shading + envmap integration, lane-dense (spatial flattened) ---
    fwd_flat, f = sh_shading(wi.reshape(N, 2, S, HW),
                             envmap.reshape(N, 3, S, HW),
                             albedo.reshape(N, 3, HW))
    fwd = fwd_flat.reshape(N, 3, H, W)

    # per-batch channel scale (SH basis on channels 3:12) -- applied inside the fused kernel
    basis = spherical_harmonics_basis(extrinsics)                        # (N,9)
    scale = jnp.ones((N, F), jnp.float32).at[:, 3:12].set(basis).reshape(N, 1, F)

    # im2col weights; pad conv2 out-channels 27 -> 32 (sublane/lane friendlier)
    c2 = 32
    w1_mat = params["w1"].reshape(9 * F, hidden)
    b1_row = params["b1"].reshape(1, hidden)
    w2_mat = jnp.pad(params["w2"], ((0, 0), (0, 0), (0, 0), (0, c2 - 27))).reshape(9 * hidden, c2)
    b2_row = jnp.pad(params["b2"], (0, c2 - 27)).reshape(1, c2)

    # --- Pallas: fused basis-scale + conv1 + conv2 + band-combine -> final ---
    final = unet_combine(nt_nhwc, scale, f, w1_mat, b1_row, w2_mat, b2_row).reshape(N, 3, H, W)

    return albedo_tex_full, final, fwd, albedo


# ----------------------------------------------------------------------------
# Pure-JAX reference (no Pallas) for a numerical sanity check.
# ----------------------------------------------------------------------------
def reference_forward(wi, envmap, uv_map, extrinsics, params):
    N, _, S, H, W = wi.shape
    albedo_tex_full = jnp.concatenate(params["albedo_layers"], axis=1)
    albedo = bilinear_sample_nchw(albedo_tex_full[0], uv_map)
    nt = bilinear_sample_nchw(params["neural_tex"], uv_map)

    albedo_ = jnp.broadcast_to(albedo[:, :, None], (N, 3, S, H, W))
    theta = wi[:, 0:1]
    phi = wi[:, 1:2]
    x = jnp.sin(theta) * jnp.cos(phi)
    y = jnp.sin(theta) * jnp.sin(phi)
    z = jnp.cos(theta)

    fwd = jnp.mean(albedo_ * envmap, axis=2)

    k00 = np.sqrt(1.0 / np.pi) / 2.0
    k1 = np.sqrt(3.0 / (4.0 * np.pi))
    k20 = np.sqrt(5.0 / (16.0 * np.pi))
    k2a = np.sqrt(15.0 / np.pi) / 2.0
    k2p1 = np.sqrt(15.0 / (4.0 * np.pi))
    k2p2 = np.sqrt(15.0 / (16.0 * np.pi))
    bands = [
        jnp.mean(k00 * albedo_, axis=2),
        jnp.mean(k1 * y * albedo_, axis=2),
        jnp.mean(k1 * z * albedo_, axis=2),
        jnp.mean(k1 * x * albedo_, axis=2),
        jnp.mean(k2a * x * y * albedo_, axis=2),
        jnp.mean(k2a * y * z * albedo_, axis=2),
        jnp.mean(k20 * (-x * x - y * y + 2 * z * z) * albedo_, axis=2),
        jnp.mean(k2p1 * z * x * albedo_, axis=2),
        jnp.mean(k2p2 * (x * x - y * y) * albedo_, axis=2),
    ]
    f = jnp.concatenate(bands, axis=1)

    basis = spherical_harmonics_basis(extrinsics)
    scale = jnp.ones((N, nt.shape[1]), jnp.float32).at[:, 3:12].set(basis)
    nt = nt * scale[:, :, None, None]

    def conv(xc, w, b, relu):
        xh = jnp.transpose(xc, (0, 2, 3, 1))
        o = lax.conv_general_dilated(xh, w, (1, 1), "SAME",
                                     dimension_numbers=("NHWC", "HWIO", "NHWC"),
                                     precision=lax.Precision.HIGHEST) + b
        if relu:
            o = jnp.maximum(o, 0.0)
        return jnp.transpose(o, (0, 3, 1, 2))

    h1 = conv(nt, params["w1"], params["b1"], True)
    T = conv(h1, params["w2"], params["b2"], False)

    final = jnp.sum(f.reshape(N, 9, 3, H, W) * T.reshape(N, 9, 3, H, W), axis=1)
    return albedo_tex_full, final, fwd, albedo


if __name__ == "__main__":
    N, S, H, W = 2, 4, 16, 16
    TEX_H = TEX_W = 32
    FEATURE_NUM = 16

    key = jax.random.PRNGKey(0)
    kp, k1, k2, k3, k4 = jax.random.split(key, 5)

    params = init_params(kp, TEX_H, TEX_W, FEATURE_NUM)

    theta = jax.random.uniform(k1, (N, 1, S, H, W), jnp.float32) * np.pi
    phi = jax.random.uniform(k2, (N, 1, S, H, W), jnp.float32) * (2 * np.pi)
    wi = jnp.concatenate([theta, phi], axis=1)                     # (N,2,S,H,W)
    envmap = jax.random.uniform(k3, (N, 3, S, H, W), jnp.float32)
    uv_map = jax.random.uniform(k4, (N, H, W, 2), jnp.float32)
    ext = jax.random.normal(jax.random.PRNGKey(7), (N, 3), jnp.float32)
    ext = ext / jnp.linalg.norm(ext, axis=1, keepdims=True)

    outs = pipeline_forward(wi, envmap, uv_map, ext, params)
    outs = jax.block_until_ready(outs)

    refs = jax.block_until_ready(reference_forward(wi, envmap, uv_map, ext, params))

    for got, ref, name in zip(outs, refs, ["albedo_tex", "final", "forward", "albedo"]):
        assert got.shape == ref.shape, (name, got.shape, ref.shape)
        np.testing.assert_allclose(np.asarray(got), np.asarray(ref),
                                   rtol=5e-3, atol=5e-3, err_msg=name)

    print("KERNEL_OK")
</pallas_src>

<mosaic_0001>
module attributes {stable_mosaic.version = 11 : i64} {
  func.func @_sh_shading_kernel(%arg0: i32, %arg1: i32, %arg2: memref<1x2x4x256xf32, #tpu.memory_space<vmem>>, %arg3: memref<1x3x4x256xf32, #tpu.memory_space<vmem>>, %arg4: memref<1x3x256xf32, #tpu.memory_space<vmem>>, %arg5: memref<1x3x256xf32, #tpu.memory_space<vmem>>, %arg6: memref<1x9x3x256xf32, #tpu.memory_space<vmem>>) attributes {dimension_semantics = [#tpu.dimension_semantics<parallel>, #tpu.dimension_semantics<parallel>], iteration_bounds = array<i64: 2, 1>, scalar_prefetch = 0 : i64, scratch_operands = 0 : i64, tpu.core_type = #tpu.core_type<tc>, window_params = [{transform_indices = @transform_0, window_bounds = array<i64: 1, 2, 4, 256>}, {transform_indices = @transform_1, window_bounds = array<i64: 1, 3, 4, 256>}, {transform_indices = @transform_2, window_bounds = array<i64: 1, 3, 256>}, {transform_indices = @transform_3, window_bounds = array<i64: 1, 3, 256>}, {transform_indices = @transform_4, window_bounds = array<i64: 1, 9, 3, 256>}]} {
    %c0 = arith.constant 0 : index
    %c0_0 = arith.constant 0 : index
    %c0_1 = arith.constant 0 : index
    %c0_2 = arith.constant 0 : index
    %0 = vector.load %arg2[%c0, %c0_0, %c0_1, %c0_2] : memref<1x2x4x256xf32, #tpu.memory_space<vmem>>, vector<1x1x4x256xf32>
    %1 = vector.shape_cast %0 : vector<1x1x4x256xf32> to vector<4x256xf32>
    %c0_3 = arith.constant 0 : index
    %c1 = arith.constant 1 : index
    %c0_4 = arith.constant 0 : index
    %c0_5 = arith.constant 0 : index
    %2 = vector.load %arg2[%c0_3, %c1, %c0_4, %c0_5] : memref<1x2x4x256xf32, #tpu.memory_space<vmem>>, vector<1x1x4x256xf32>
    %3 = vector.shape_cast %2 : vector<1x1x4x256xf32> to vector<4x256xf32>
    %c0_6 = arith.constant 0 : index
    %c0_7 = arith.constant 0 : index
    %c0_8 = arith.constant 0 : index
    %4 = vector.load %arg4[%c0_6, %c0_7, %c0_8] : memref<1x3x256xf32, #tpu.memory_space<vmem>>, vector<1x3x256xf32>
    %5 = vector.shape_cast %4 : vector<1x3x256xf32> to vector<3x256xf32>
    %c0_9 = arith.constant 0 : index
    %c0_10 = arith.constant 0 : index
    %c0_11 = arith.constant 0 : index
    %c0_12 = arith.constant 0 : index
    %6 = vector.load %arg3[%c0_9, %c0_10, %c0_11, %c0_12] : memref<1x3x4x256xf32, #tpu.memory_space<vmem>>, vector<1x3x4x256xf32>
    %7 = vector.shape_cast %6 : vector<1x3x4x256xf32> to vector<3x4x256xf32>
    %cst = arith.constant dense<0.000000e+00> : vector<3x256xf32>
    %8 = vector.multi_reduction <add>, %7, %cst [1] : vector<3x4x256xf32> to vector<3x256xf32>
    %cst_13 = arith.constant 4.000000e+00 : f32
    %9 = vector.broadcast %cst_13 : f32 to vector<3x256xf32>
    %10 = arith.divf %8, %9 : vector<3x256xf32>
    %11 = arith.mulf %5, %10 : vector<3x256xf32>
    %c0_14 = arith.constant 0 : index
    %c0_15 = arith.constant 0 : index
    %c0_16 = arith.constant 0 : index
    %12 = vector.load %arg5[%c0_14, %c0_15, %c0_16] : memref<1x3x256xf32, #tpu.memory_space<vmem>>, vector<1x3x256xf32>
    %13 = vector.shape_cast %12 : vector<1x3x256xf32> to vector<3x256xf32>
    %14 = vector.shape_cast %11 : vector<3x256xf32> to vector<1x3x256xf32>
    tpu.vector_store %arg5[%c0_14, %c0_15, %c0_16], %14 {strides = array<i32>} : memref<1x3x256xf32, #tpu.memory_space<vmem>>, vector<1x3x256xf32>,
    %15 = math.sin %1 : vector<4x256xf32>
    %16 = math.cos %3 : vector<4x256xf32>
    %17 = arith.mulf %15, %16 : vector<4x256xf32>
    %18 = math.sin %3 : vector<4x256xf32>
    %19 = arith.mulf %15, %18 : vector<4x256xf32>
    %20 = math.cos %1 : vector<4x256xf32>
    %cst_17 = arith.constant 0.282094806 : f32
    %21 = vector.broadcast %cst_17 : f32 to vector<3x256xf32>
    %22 = arith.mulf %21, %5 : vector<3x256xf32>
    %c0_18 = arith.constant 0 : index
    %c0_19 = arith.constant 0 : index
    %c0_20 = arith.constant 0 : index
    %c0_21 = arith.constant 0 : index
    %23 = vector.load %arg6[%c0_18, %c0_19, %c0_20, %c0_21] : memref<1x9x3x256xf32, #tpu.memory_space<vmem>>, vector<1x1x3x256xf32>
    %24 = vector.shape_cast %23 : vector<1x1x3x256xf32> to vector<3x256xf32>
    %25 = vector.shape_cast %22 : vector<3x256xf32> to vector<1x1x3x256xf32>
    tpu.vector_store %arg6[%c0_18, %c0_19, %c0_20, %c0_21], %25 {strides = array<i32>} : memref<1x9x3x256xf32, #tpu.memory_space<vmem>>, vector<1x1x3x256xf32>,
    %cst_22 = arith.constant dense<0.000000e+00> : vector<256xf32>
    %26 = vector.multi_reduction <add>, %19, %cst_22 [0] : vector<4x256xf32> to vector<256xf32>
    %27 = vector.shape_cast %26 : vector<256xf32> to vector<1x256xf32>
    %cst_23 = arith.constant 2.500000e-01 : f32
    %28 = vector.broadcast %cst_23 : f32 to vector<1x256xf32>
    %29 = arith.mulf %27, %28 : vector<1x256xf32>
    %cst_24 = arith.constant 0.488602519 : f32
    %30 = vector.broadcast %cst_24 : f32 to vector<1x256xf32>
    %31 = arith.mulf %30, %29 : vector<1x256xf32>
    %32 = vector.broadcast %31 : vector<1x256xf32> to vector<3x256xf32>
    %33 = arith.mulf %32, %5 : vector<3x256xf32>
    %c0_25 = arith.constant 0 : index
    %c1_26 = arith.constant 1 : index
    %c0_27 = arith.constant 0 : index
    %c0_28 = arith.constant 0 : index
    %34 = vector.load %arg6[%c0_25, %c1_26, %c0_27, %c0_28] : memref<1x9x3x256xf32, #tpu.memory_space<vmem>>, vector<1x1x3x256xf32>
    %35 = vector.shape_cast %34 : vector<1x1x3x256xf32> to vector<3x256xf32>
    %36 = vector.shape_cast %33 : vector<3x256xf32> to vector<1x1x3x256xf32>
    tpu.vector_store %arg6[%c0_25, %c1_26, %c0_27, %c0_28], %36 {strides = array<i32>} : memref<1x9x3x256xf32, #tpu.memory_space<vmem>>, vector<1x1x3x256xf32>,
    %cst_29 = arith.constant dense<0.000000e+00> : vector<256xf32>
    %37 = vector.multi_reduction <add>, %20, %cst_29 [0] : vector<4x256xf32> to vector<256xf32>
    %38 = vector.shape_cast %37 : vector<256xf32> to vector<1x256xf32>
    %cst_30 = arith.constant 2.500000e-01 : f32
    %39 = vector.broadcast %cst_30 : f32 to vector<1x256xf32>
    %40 = arith.mulf %38, %39 : vector<1x256xf32>
    %cst_31 = arith.constant 0.488602519 : f32
    %41 = vector.broadcast %cst_31 : f32 to vector<1x256xf32>
    %42 = arith.mulf %41, %40 : vector<1x256xf32>
    %43 = vector.broadcast %42 : vector<1x256xf32> to vector<3x256xf32>
    %44 = arith.mulf %43, %5 : vector<3x256xf32>
    %c0_32 = arith.constant 0 : index
    %c2 = arith.constant 2 : index
    %c0_33 = arith.constant 0 : index
    %c0_34 = arith.constant 0 : index
    %45 = vector.load %arg6[%c0_32, %c2, %c0_33, %c0_34] : memref<1x9x3x256xf32, #tpu.memory_space<vmem>>, vector<1x1x3x256xf32>
    %46 = vector.shape_cast %45 : vector<1x1x3x256xf32> to vector<3x256xf32>
    %47 = vector.shape_cast %44 : vector<3x256xf32> to vector<1x1x3x256xf32>
    tpu.vector_store %arg6[%c0_32, %c2, %c0_33, %c0_34], %47 {strides = array<i32>} : memref<1x9x3x256xf32, #tpu.memory_space<vmem>>, vector<1x1x3x256xf32>,
    %cst_35 = arith.constant dense<0.000000e+00> : vector<256xf32>
    %48 = vector.multi_reduction <add>, %17, %cst_35 [0] : vector<4x256xf32> to vector<256xf32>
    %49 = vector.shape_cast %48 : vector<256xf32> to vector<1x256xf32>
    %cst_36 = arith.constant 2.500000e-01 : f32
    %50 = vector.broadcast %cst_36 : f32 to vector<1x256xf32>
    %51 = arith.mulf %49, %50 : vector<1x256xf32>
    %cst_37 = arith.constant 0.488602519 : f32
    %52 = vector.broadcast %cst_37 : f32 to vector<1x256xf32>
    %53 = arith.mulf %52, %51 : vector<1x256xf32>
    %54 = vector.broadcast %53 : vector<1x256xf32> to vector<3x256xf32>
    %55 = arith.mulf %54, %5 : vector<3x256xf32>
    %c0_38 = arith.constant 0 : index
    %c3 = arith.constant 3 : index
    %c0_39 = arith.constant 0 : index
    %c0_40 = arith.constant 0 : index
    %56 = vector.load %arg6[%c0_38, %c3, %c0_39, %c0_40] : memref<1x9x3x256xf32, #tpu.memory_space<vmem>>, vector<1x1x3x256xf32>
    %57 = vector.shape_cast %56 : vector<1x1x3x256xf32> to vector<3x256xf32>
    %58 = vector.shape_cast %55 : vector<3x256xf32> to vector<1x1x3x256xf32>
    tpu.vector_store %arg6[%c0_38, %c3, %c0_39, %c0_40], %58 {strides = array<i32>} : memref<1x9x3x256xf32, #tpu.memory_space<vmem>>, vector<1x1x3x256xf32>,
    %59 = arith.mulf %17, %19 : vector<4x256xf32>
    %cst_41 = arith.constant dense<0.000000e+00> : vector<256xf32>
    %60 = vector.multi_reduction <add>, %59, %cst_41 [0] : vector<4x256xf32> to vector<256xf32>
    %61 = vector.shape_cast %60 : vector<256xf32> to vector<1x256xf32>
    %cst_42 = arith.constant 2.500000e-01 : f32
    %62 = vector.broadcast %cst_42 : f32 to vector<1x256xf32>
    %63 = arith.mulf %61, %62 : vector<1x256xf32>
    %cst_43 = arith.constant 1.09254849 : f32
    %64 = vector.broadcast %cst_43 : f32 to vector<1x256xf32>
    %65 = arith.mulf %64, %63 : vector<1x256xf32>
    %66 = vector.broadcast %65 : vector<1x256xf32> to vector<3x256xf32>
    %67 = arith.mulf %66, %5 : vector<3x256xf32>
    %c0_44 = arith.constant 0 : index
    %c4 = arith.constant 4 : index
    %c0_45 = arith.constant 0 : index
    %c0_46 = arith.constant 0 : index
    %68 = vector.load %arg6[%c0_44, %c4, %c0_45, %c0_46] : memref<1x9x3x256xf32, #tpu.memory_space<vmem>>, vector<1x1x3x256xf32>
    %69 = vector.shape_cast %68 : vector<1x1x3x256xf32> to vector<3x256xf32>
    %70 = vector.shape_cast %67 : vector<3x256xf32> to vector<1x1x3x256xf32>
    tpu.vector_store %arg6[%c0_44, %c4, %c0_45, %c0_46], %70 {strides = array<i32>} : memref<1x9x3x256xf32, #tpu.memory_space<vmem>>, vector<1x1x3x256xf32>,
    %71 = arith.mulf %19, %20 : vector<4x256xf32>
    %cst_47 = arith.constant dense<0.000000e+00> : vector<256xf32>
    %72 = vector.multi_reduction <add>, %71, %cst_47 [0] : vector<4x256xf32> to vector<256xf32>
    %73 = vector.shape_cast %72 : vector<256xf32> to vector<1x256xf32>
    %cst_48 = arith.constant 2.500000e-01 : f32
    %74 = vector.broadcast %cst_48 : f32 to vector<1x256xf32>
    %75 = arith.mulf %73, %74 : vector<1x256xf32>
    %cst_49 = arith.constant 1.09254849 : f32
    %76 = vector.broadcast %cst_49 : f32 to vector<1x256xf32>
    %77 = arith.mulf %76, %75 : vector<1x256xf32>
    %78 = vector.broadcast %77 : vector<1x256xf32> to vector<3x256xf32>
    %79 = arith.mulf %78, %5 : vector<3x256xf32>
    %c0_50 = arith.constant 0 : index
    %c5 = arith.constant 5 : index
    %c0_51 = arith.constant 0 : index
    %c0_52 = arith.constant 0 : index
    %80 = vector.load %arg6[%c0_50, %c5, %c0_51, %c0_52] : memref<1x9x3x256xf32, #tpu.memory_space<vmem>>, vector<1x1x3x256xf32>
    %81 = vector.shape_cast %80 : vector<1x1x3x256xf32> to vector<3x256xf32>
    %82 = vector.shape_cast %79 : vector<3x256xf32> to vector<1x1x3x256xf32>
    tpu.vector_store %arg6[%c0_50, %c5, %c0_51, %c0_52], %82 {strides = array<i32>} : memref<1x9x3x256xf32, #tpu.memory_space<vmem>>, vector<1x1x3x256xf32>,
    %cst_53 = arith.constant 2.000000e+00 : f32
    %83 = vector.broadcast %cst_53 : f32 to vector<4x256xf32>
    %84 = arith.mulf %83, %20 : vector<4x256xf32>
    %85 = arith.mulf %84, %20 : vector<4x256xf32>
    %86 = arith.mulf %17, %17 : vector<4x256xf32>
    %87 = arith.subf %85, %86 : vector<4x256xf32>
    %88 = arith.mulf %19, %19 : vector<4x256xf32>
    %89 = arith.subf %87, %88 : vector<4x256xf32>
    %cst_54 = arith.constant dense<0.000000e+00> : vector<256xf32>
    %90 = vector.multi_reduction <add>, %89, %cst_54 [0] : vector<4x256xf32> to vector<256xf32>
    %91 = vector.shape_cast %90 : vector<256xf32> to vector<1x256xf32>
    %cst_55 = arith.constant 2.500000e-01 : f32
    %92 = vector.broadcast %cst_55 : f32 to vector<1x256xf32>
    %93 = arith.mulf %91, %92 : vector<1x256xf32>
    %cst_56 = arith.constant 0.31539157 : f32
    %94 = vector.broadcast %cst_56 : f32 to vector<1x256xf32>
    %95 = arith.mulf %94, %93 : vector<1x256xf32>
    %96 = vector.broadcast %95 : vector<1x256xf32> to vector<3x256xf32>
    %97 = arith.mulf %96, %5 : vector<3x256xf32>
    %c0_57 = arith.constant 0 : index
    %c6 = arith.constant 6 : index
    %c0_58 = arith.constant 0 : index
    %c0_59 = arith.constant 0 : index
    %98 = vector.load %arg6[%c0_57, %c6, %c0_58, %c0_59] : memref<1x9x3x256xf32, #tpu.memory_space<vmem>>, vector<1x1x3x256xf32>
    %99 = vector.shape_cast %98 : vector<1x1x3x256xf32> to vector<3x256xf32>
    %100 = vector.shape_cast %97 : vector<3x256xf32> to vector<1x1x3x256xf32>
    tpu.vector_store %arg6[%c0_57, %c6, %c0_58, %c0_59], %100 {strides = array<i32>} : memref<1x9x3x256xf32, #tpu.memory_space<vmem>>, vector<1x1x3x256xf32>,
    %101 = arith.mulf %20, %17 : vector<4x256xf32>
    %cst_60 = arith.constant dense<0.000000e+00> : vector<256xf32>
    %102 = vector.multi_reduction <add>, %101, %cst_60 [0] : vector<4x256xf32> to vector<256xf32>
    %103 = vector.shape_cast %102 : vector<256xf32> to vector<1x256xf32>
    %cst_61 = arith.constant 2.500000e-01 : f32
    %104 = vector.broadcast %cst_61 : f32 to vector<1x256xf32>
    %105 = arith.mulf %103, %104 : vector<1x256xf32>
    %cst_62 = arith.constant 1.09254849 : f32
    %106 = vector.broadcast %cst_62 : f32 to vector<1x256xf32>
    %107 = arith.mulf %106, %105 : vector<1x256xf32>
    %108 = vector.broadcast %107 : vector<1x256xf32> to vector<3x256xf32>
    %109 = arith.mulf %108, %5 : vector<3x256xf32>
    %c0_63 = arith.constant 0 : index
    %c7 = arith.constant 7 : index
    %c0_64 = arith.constant 0 : index
    %c0_65 = arith.constant 0 : index
    %110 = vector.load %arg6[%c0_63, %c7, %c0_64, %c0_65] : memref<1x9x3x256xf32, #tpu.memory_space<vmem>>, vector<1x1x3x256xf32>
    %111 = vector.shape_cast %110 : vector<1x1x3x256xf32> to vector<3x256xf32>
    %112 = vector.shape_cast %109 : vector<3x256xf32> to vector<1x1x3x256xf32>
    tpu.vector_store %arg6[%c0_63, %c7, %c0_64, %c0_65], %112 {strides = array<i32>} : memref<1x9x3x256xf32, #tpu.memory_space<vmem>>, vector<1x1x3x256xf32>,
    %113 = arith.mulf %17, %17 : vector<4x256xf32>
    %114 = arith.mulf %19, %19 : vector<4x256xf32>
    %115 = arith.subf %113, %114 : vector<4x256xf32>
    %cst_66 = arith.constant dense<0.000000e+00> : vector<256xf32>
    %116 = vector.multi_reduction <add>, %115, %cst_66 [0] : vector<4x256xf32> to vector<256xf32>
    %117 = vector.shape_cast %116 : vector<256xf32> to vector<1x256xf32>
    %cst_67 = arith.constant 2.500000e-01 : f32
    %118 = vector.broadcast %cst_67 : f32 to vector<1x256xf32>
    %119 = arith.mulf %117, %118 : vector<1x256xf32>
    %cst_68 = arith.constant 0.546274245 : f32
    %120 = vector.broadcast %cst_68 : f32 to vector<1x256xf32>
    %121 = arith.mulf %120, %119 : vector<1x256xf32>
    %122 = vector.broadcast %121 : vector<1x256xf32> to vector<3x256xf32>
    %123 = arith.mulf %122, %5 : vector<3x256xf32>
    %c0_69 = arith.constant 0 : index
    %c8 = arith.constant 8 : index
    %c0_70 = arith.constant 0 : index
    %c0_71 = arith.constant 0 : index
    %124 = vector.load %arg6[%c0_69, %c8, %c0_70, %c0_71] : memref<1x9x3x256xf32, #tpu.memory_space<vmem>>, vector<1x1x3x256xf32>
    %125 = vector.shape_cast %124 : vector<1x1x3x256xf32> to vector<3x256xf32>
    %126 = vector.shape_cast %123 : vector<3x256xf32> to vector<1x1x3x256xf32>
    tpu.vector_store %arg6[%c0_69, %c8, %c0_70, %c0_71], %126 {strides = array<i32>} : memref<1x9x3x256xf32, #tpu.memory_space<vmem>>, vector<1x1x3x256xf32>,
    return
  }
  func.func @transform_0(%arg0: i32, %arg1: i32) -> (i32, i32, i32, i32) {
    %c0_i32 = arith.constant 0 : i32
    %c0_i32_0 = arith.constant 0 : i32
    %c0_i32_1 = arith.constant 0 : i32
    return %arg0, %c0_i32, %c0_i32_0, %arg1 : i32, i32, i32, i32
  }
  func.func @transform_1(%arg0: i32, %arg1: i32) -> (i32, i32, i32, i32) {
    %c0_i32 = arith.constant 0 : i32
    %c0_i32_0 = arith.constant 0 : i32
    %c0_i32_1 = arith.constant 0 : i32
    return %arg0, %c0_i32, %c0_i32_0, %arg1 : i32, i32, i32, i32
  }
  func.func @transform_2(%arg0: i32, %arg1: i32) -> (i32, i32, i32) {
    %c0_i32 = arith.constant 0 : i32
    %c0_i32_0 = arith.constant 0 : i32
    return %arg0, %c0_i32, %arg1 : i32, i32, i32
  }
  func.func @transform_3(%arg0: i32, %arg1: i32) -> (i32, i32, i32) {
    %c0_i32 = arith.constant 0 : i32
    %c0_i32_0 = arith.constant 0 : i32
    return %arg0, %c0_i32, %arg1 : i32, i32, i32
  }
  func.func @transform_4(%arg0: i32, %arg1: i32) -> (i32, i32, i32, i32) {
    %c0_i32 = arith.constant 0 : i32
    %c0_i32_0 = arith.constant 0 : i32
    %c0_i32_1 = arith.constant 0 : i32
    return %arg0, %c0_i32, %c0_i32_0, %arg1 : i32, i32, i32, i32
  }
}

</mosaic_0001>

<llo_original>
// kernel: tpu_custom_call.1
$region0: #{tpu_custom_call.1}
  #allocation0 [shape = 'u32[]', space=smem, size = 0x4, offset = 0x4, fixed_abs, tag = 'smem constant byte address 0x4 - core index']
  #allocation1 [shape = 'u32[72,128]{1,0:T(1,128)}', space=vmem, size = 0x9000, scoped, tag = 'internal scratch']
  %s0 = inlined_call_operand.hbm [shape: f32[2,2,4,256], index: 0, kind: input, shape index: {}]
  %s1 = inlined_call_operand.hbm [shape: f32[2,3,4,256], index: 1, kind: input, shape index: {}]
  %s2 = inlined_call_operand.vmem [shape: f32[2,3,256], index: 2, kind: input, shape index: {}]
  %s3 = inlined_call_operand.vmem [shape: f32[2,3,256], index: 3, kind: output, shape index: {0}]
  %s4 = inlined_call_operand.vmem [shape: f32[2,9,3,256], index: 4, kind: output, shape index: {1}]
  %5 = xla_tuple %s3, %s4
  %s6 = sld [smem:[#allocation0]]
  $region61: #{tpu_custom_call.1} parent=0
    _
  %s8 = ssub.s32 1, %s6
  %s9 = scalar_select 0, %s8, %s6
  $region1: #{tpu_custom_call.1} parent=0
    #allocation2 [shape = 'u8[16384]{0}', space=vmem, size = 0x4000, scoped, tag = 'input window, operand 0']
    #allocation3 [shape = 's32[2]{0}', space=sflag, size = 0x8, scoped, tag = 'scoped memory for tpu_custom_call.1']
    #allocation4 [shape = 'u8[24576]{0}', space=vmem, size = 0x6000, scoped, tag = 'input window, operand 1']
    #allocation5 [shape = 's32[2]{0}', space=sflag, size = 0x8, scoped, tag = 'scoped memory for tpu_custom_call.1']
    %10 = vsyncpa [#allocation3], 0
    %s11 = scalar_lea.sflag [#allocation3], 1
    %12 = vsyncpa %s11, 0
    %13 = vsyncpa [#allocation5], 0
    %s14 = scalar_lea.sflag [#allocation5], 1
    %15 = vsyncpa %s14, 0
    loop: start=0, step=1, limit=4
    $region2: #{tpu_custom_call.1} parent=1 // loop_pre_header
      _
    $region3: #{tpu_custom_call.1} parent=1 // loop_header
      %s17 = sphi 0, %s21
      %p18 = scmp.ge.s32.totalorder %s17, 4
      %s24 = sphi 0, %s36
      %s25 = sphi 0, %s32
      %s26 = sphi 0, %s24
      %s27 = sphi 0, %s25
      %s28 = sphi 0, %s26
      %s29 = sphi 0, %s27
      %s41 = sphi 0, %s43
      %s44 = sphi 0, %s41
      %s45 = sphi 0, %s44
      %s61 = sphi 0, %s45
      %s69 = sphi 0, %s71
      %s72 = sphi 0, %s69
      %s73 = sphi 0, %s72
      %s89 = sphi 0, %s73
      %s97 = sphi 0, %s99
      %s100 = sphi 0, %s97
      %s101 = sphi 0, %s100
      %s117 = sphi 0, %s101
      %s125 = sphi 0, %s127
      %s128 = sphi 0, %s125
      %s129 = sphi 0, %s128
      %s145 = sphi 0, %s129
      %s153 = sphi 0, %s155
      %s156 = sphi 0, %s153
      %s157 = sphi 0, %s156
      %s173 = sphi 0, %s157
    $region4: #{tpu_custom_call.1} parent=1 // loop_header_branch
      %20 = sbr.rel (%p18) target = $region8
    $region5: #{tpu_custom_call.1} parent=1 // loop_body
      %s22 = ssub.s32 %s17, 1
      %s23 = ssub.s32 %s17, 2
      %s30 = sadd.s32 1, %s25
      %p31 = scmp.ge.s32.totalorder %s30, 1
      %s32 = scalar_select %p31, 0, %s30
      %s33 = sadd.s32 1, %s24
      %s34 = scalar_select %p31, %s33, %s24
      %p35 = scmp.ge.s32.totalorder %s34, 2
      %s36 = scalar_select %p35, 0, %s34
      %s37 = ssub.s32 %s24, %s36
      %s38 = ssub.s32 %s25, %s32
      %s39 = sor.u32 %s37, %s38
      %p40 = scmp.eq.s32.totalorder %s39, 0
      %s42 = sadd.s32 %s41, 1
      %s43 = scalar_select %p40, %s41, %s42
      %p46 = pneg %p40
      %p47 = scmp.eq.s32.totalorder %s17, 1
      %p48 = por %p46, %p47
      %p49 = scmp.ne.s32.totalorder %s41, %s44
      %p50 = scmp.eq.s32.totalorder %s17, 0
      %p51 = por %p49, %p50
      %p52 = scmp.ne.s32.totalorder %s41, %s44
      %p53 = scmp.eq.s32.totalorder %s22, 1
      %p54 = por %p52, %p53
      %p55 = scmp.ne.s32.totalorder %s44, %s45
      %p56 = scmp.eq.s32.totalorder %s22, 0
      %p57 = por %p55, %p56
      %p58 = scmp.ne.s32.totalorder %s44, %s45
      %p59 = scmp.eq.s32.totalorder %s23, 1
      %p60 = por %p58, %p59
      %p62 = scmp.ne.s32.totalorder %s45, %s61
      %p63 = scmp.eq.s32.totalorder %s23, 0
      %p64 = por %p62, %p63
      %s65 = ssub.s32 %s24, %s36
      %s66 = ssub.s32 %s25, %s32
      %s67 = sor.u32 %s65, %s66
      %p68 = scmp.eq.s32.totalorder %s67, 0
      %s70 = sadd.s32 %s69, 1
      %s71 = scalar_select %p68, %s69, %s70
      %p74 = pneg %p68
      %p75 = scmp.eq.s32.totalorder %s17, 1
      %p76 = por %p74, %p75
      %p77 = scmp.ne.s32.totalorder %s69, %s72
      %p78 = scmp.eq.s32.totalorder %s17, 0
      %p79 = por %p77, %p78
      %p80 = scmp.ne.s32.totalorder %s69, %s72
      %p81 = scmp.eq.s32.totalorder %s22, 1
      %p82 = por %p80, %p81
      %p83 = scmp.ne.s32.totalorder %s72, %s73
      %p84 = scmp.eq.s32.totalorder %s22, 0
      %p85 = por %p83, %p84
      %p86 = scmp.ne.s32.totalorder %s72, %s73
      %p87 = scmp.eq.s32.totalorder %s23, 1
      %p88 = por %p86, %p87
      %p90 = scmp.ne.s32.totalorder %s73, %s89
      %p91 = scmp.eq.s32.totalorder %s23, 0
      %p92 = por %p90, %p91
      %s93 = ssub.s32 %s24, %s36
      %s94 = ssub.s32 %s25, %s32
      %s95 = sor.u32 %s93, %s94
      %p96 = scmp.eq.s32.totalorder %s95, 0
      %s98 = sadd.s32 %s97, 1
      %s99 = scalar_select %p96, %s97, %s98
      %p102 = pneg %p96
      %p103 = scmp.eq.s32.totalorder %s17, 1
      %p104 = por %p102, %p103
      %p105 = scmp.ne.s32.totalorder %s97, %s100
      %p106 = scmp.eq.s32.totalorder %s17, 0
      %p107 = por %p105, %p106
      %p108 = scmp.ne.s32.totalorder %s97, %s100
      %p109 = scmp.eq.s32.totalorder %s22, 1
      %p110 = por %p108, %p109
      %p111 = scmp.ne.s32.totalorder %s100, %s101
      %p112 = scmp.eq.s32.totalorder %s22, 0
      %p113 = por %p111, %p112
      %p114 = scmp.ne.s32.totalorder %s100, %s101
      %p115 = scmp.eq.s32.totalorder %s23, 1
      %p116 = por %p114, %p115
      %p118 = scmp.ne.s32.totalorder %s101, %s117
      %p119 = scmp.eq.s32.totalorder %s23, 0
      %p120 = por %p118, %p119
      %s121 = ssub.s32 %s24, %s36
      %s122 = ssub.s32 %s25, %s32
      %s123 = sor.u32 %s121, %s122
      %p124 = scmp.eq.s32.totalorder %s123, 0
      %s126 = sadd.s32 %s125, 1
      %s127 = scalar_select %p124, %s125, %s126
      %p130 = pneg %p124
      %p131 = scmp.eq.s32.totalorder %s17, 1
      %p132 = por %p130, %p131
      %p133 = scmp.ne.s32.totalorder %s125, %s128
      %p134 = scmp.eq.s32.totalorder %s17, 0
      %p135 = por %p133, %p134
      %p136 = scmp.ne.s32.totalorder %s125, %s128
      %p137 = scmp.eq.s32.totalorder %s22, 1
      %p138 = por %p136, %p137
      %p139 = scmp.ne.s32.totalorder %s128, %s129
      %p140 = scmp.eq.s32.totalorder %s22, 0
      %p141 = por %p139, %p140
      %p142 = scmp.ne.s32.totalorder %s128, %s129
      %p143 = scmp.eq.s32.totalorder %s23, 1
      %p144 = por %p142, %p143
      %p146 = scmp.ne.s32.totalorder %s129, %s145
      %p147 = scmp.eq.s32.totalorder %s23, 0
      %p148 = por %p146, %p147
      %s149 = ssub.s32 %s24, %s36
      %s150 = ssub.s32 %s25, %s32
      %s151 = sor.u32 %s149, %s150
      %p152 = scmp.eq.s32.totalorder %s151, 0
      %s154 = sadd.s32 %s153, 1
      %s155 = scalar_select %p152, %s153, %s154
      %p158 = pneg %p152
      %p159 = scmp.eq.s32.totalorder %s17, 1
      %p160 = por %p158, %p159
      %p161 = scmp.ne.s32.totalorder %s153, %s156
      %p162 = scmp.eq.s32.totalorder %s17, 0
      %p163 = por %p161, %p162
      %p164 = scmp.ne.s32.totalorder %s153, %s156
      %p165 = scmp.eq.s32.totalorder %s22, 1
      %p166 = por %p164, %p165
      %p167 = scmp.ne.s32.totalorder %s156, %s157
      %p168 = scmp.eq.s32.totalorder %s22, 0
      %p169 = por %p167, %p168
      %p170 = scmp.ne.s32.totalorder %s156, %s157
      %p171 = scmp.eq.s32.totalorder %s23, 1
      %p172 = por %p170, %p171
      %p174 = scmp.ne.s32.totalorder %s157, %s173
      %p175 = scmp.eq.s32.totalorder %s23, 0
      %p176 = por %p174, %p175
      %p177 = scmp.le.s32.totalorder 1, %s17
      %p178 = scmp.lt.s32.totalorder %s17, 3
      %p179 = pnand %p177, %p178
      %p180 = pneg %p179
      // Predicated region
      $region9: #{tpu_custom_call.1} parent=5 // pred_check
        _
      $region10: #{tpu_custom_call.1} parent=5 // pred_check_branch
        %182 = sbr.rel (%p179) target = $region12
      $region11: #{tpu_custom_call.1} parent=5 // pred_region
        %s183 = ssub.s32 %s17, 1
      $region12: #{tpu_custom_call.1} parent=5 // pred_fallthru
        _
      %p184 = scmp.lt.s32.totalorder %s17, 2
      // Predicated region
      $region13: #{tpu_custom_call.1} parent=5 // pred_check
        %p185 = pneg %p184
      $region14: #{tpu_custom_call.1} parent=5 // pred_check_branch
        %187 = sbr.rel (%p185) target = $region16
      $region15: #{tpu_custom_call.1} parent=5 // pred_region
        // Predicated region
        $region17: #{tpu_custom_call.1} parent=15 // pred_check
          %p188 = pneg %p51
        $region18: #{tpu_custom_call.1} parent=15 // pred_check_branch
          %190 = sbr.rel (%p188) target = $region20
        $region19: #{tpu_custom_call.1} parent=15 // pred_region
          %s191 = sand.u32 %s41, 1
          %s192 = scalar_lea.sflag [#allocation3], %s191
          %s193 = sand.u32 %s41, 1
          %s194 = smul.addr %s193, 16
          %s195 = scalar_lea.vmem [#allocation2], %s194
          %s196 = smul.u32 2, %s25
          %198 = vsyncadd %s192, 0
          %s199 = smul.addr %s24, 4
          %s200 = sadd.s32 %s196, %s199
          %s201 = smul.addr %s200, 4
          %s202 = scalar_lea.hbm %s0, %s201
          %s203 = sshll.u32 %s202, 4
          %s204 = int_to_ptr.hbm [resolvable:$true] %s203
          %s205 = sshll.u32 %s195, 4
          %s206 = int_to_ptr.vmem [resolvable:$true] %s205
          %211 = dma.hbm_to_vmem [thread:$0]  %s204, 256, %s206, %s192, 128, 128, 8
        $region20: #{tpu_custom_call.1} parent=15 // pred_fallthru
          _
        // Predicated region
        $region21: #{tpu_custom_call.1} parent=15 // pred_check
          %p212 = pneg %p79
        $region22: #{tpu_custom_call.1} parent=15 // pred_check_branch
          %214 = sbr.rel (%p212) target = $region24
        $region23: #{tpu_custom_call.1} parent=15 // pred_region
          %s215 = sand.u32 %s69, 1
          %s216 = scalar_lea.sflag [#allocation5], %s215
          %s217 = sand.u32 %s69, 1
          %s218 = smul.addr %s217, 24
          %s219 = scalar_lea.vmem [#allocation4], %s218
          %s220 = smul.u32 2, %s25
          %222 = vsyncadd %s216, 0
          %s223 = smul.addr %s24, 6
          %s224 = sadd.s32 %s220, %s223
          %s225 = smul.addr %s224, 4
          %s226 = scalar_lea.hbm %s1, %s225
          %s227 = sshll.u32 %s226, 4
          %s228 = int_to_ptr.hbm [resolvable:$true] %s227
          %s229 = sshll.u32 %s219, 4
          %s230 = int_to_ptr.vmem [resolvable:$true] %s229
          %235 = dma.hbm_to_vmem [thread:$0]  %s228, 384, %s230, %s216, 128, 128, 8
        $region24: #{tpu_custom_call.1} parent=15 // pred_fallthru
          _
        // Predicated region
        $region25: #{tpu_custom_call.1} parent=15 // pred_check
          %p236 = pneg %p107
        $region26: #{tpu_custom_call.1} parent=15 // pred_check_branch
          %238 = sbr.rel (%p236) target = $region28
        $region27: #{tpu_custom_call.1} parent=15 // pred_region
          %s239 = smul.u32 2, %s25
          %p240 = scmp.lt.s32.totalorder %s24, 1
          %s241 = scalar_select %p240, %s24, 1
          %p242 = scmp.lt.s32.totalorder %s239, 1
          %s243 = scalar_select %p242, %s239, 1
          %s244 = smul.addr %s241, 2
          %s245 = sadd.s32 %s243, %s244
          %s246 = smul.addr %s245, 4
          %s247 = scalar_lea.vmem %s2, %s246
          %s248 = smul.u32 2, %s25
        $region28: #{tpu_custom_call.1} parent=15 // pred_fallthru
          _
      $region16: #{tpu_custom_call.1} parent=5 // pred_fallthru
        _
      %p249 = scmp.le.s32.totalorder 1, %s17
      %p250 = scmp.lt.s32.totalorder %s17, 3
      %p251 = pnand %p249, %p250
      %p252 = pneg %p251
      // Predicated region
      $region29: #{tpu_custom_call.1} parent=5 // pred_check
        _
      $region30: #{tpu_custom_call.1} parent=5 // pred_check_branch
        %254 = sbr.rel (%p251) target = $region32
      $region31: #{tpu_custom_call.1} parent=5 // pred_region
        %s255 = ssub.s32 %s17, 1
        %s256 = sand.u32 %s44, 1
        %s257 = scalar_lea.sflag [#allocation3], %s256
        %s258 = sand.u32 %s44, 1
        %s259 = smul.addr %s258, 16
        %s260 = scalar_lea.vmem [#allocation2], %s259
        // Predicated region
        $region33: #{tpu_custom_call.1} parent=31 // pred_check
          %p261 = pneg %p57
        $region34: #{tpu_custom_call.1} parent=31 // pred_check_branch
          %263 = sbr.rel (%p261) target = $region36
        $region35: #{tpu_custom_call.1} parent=31 // pred_region
          %265 = dma.done %s257, 256
        $region36: #{tpu_custom_call.1} parent=31 // pred_fallthru
          _
        %s266 = sand.u32 %s72, 1
        %s267 = scalar_lea.sflag [#allocation5], %s266
        %s268 = sand.u32 %s72, 1
        %s269 = smul.addr %s268, 24
        %s270 = scalar_lea.vmem [#allocation4], %s269
        // Predicated region
        $region37: #{tpu_custom_call.1} parent=31 // pred_check
          %p271 = pneg %p85
        $region38: #{tpu_custom_call.1} parent=31 // pred_check_branch
          %273 = sbr.rel (%p271) target = $region40
        $region39: #{tpu_custom_call.1} parent=31 // pred_region
          %275 = dma.done %s267, 384
        $region40: #{tpu_custom_call.1} parent=31 // pred_fallthru
          _
        %s276 = sand.u32 %s44, 1
        %s277 = scalar_lea.sflag [#allocation3], %s276
        %s278 = sand.u32 %s44, 1
        %s279 = smul.addr %s278, 16
        %s280 = scalar_lea.vmem [#allocation2], %s279
        %p281 = pneg %p57
        %p282 = pneg %p54
        %s283 = sand.u32 %s72, 1
        %s284 = scalar_lea.sflag [#allocation5], %s283
        %s285 = sand.u32 %s72, 1
        %s286 = smul.addr %s285, 24
        %s287 = scalar_lea.vmem [#allocation4], %s286
        %p288 = pneg %p85
        %p289 = pneg %p82
        %s290 = smul.u32 2, %s27
        %p291 = scmp.lt.s32.totalorder %s26, 1
        %s292 = scalar_select %p291, %s26, 1
        %p293 = scmp.lt.s32.totalorder %s290, 1
        %s294 = scalar_select %p293, %s290, 1
        %s295 = smul.addr %s292, 2
        %s296 = sadd.s32 %s294, %s295
        %s297 = smul.addr %s296, 4
        %s298 = scalar_lea.vmem %s2, %s297
        %p299 = pneg %p113
        %p300 = pneg %p110
        %p301 = pneg %p141
        %p302 = pneg %p138
        %s303 = smul.u32 2, %s27
        %p304 = scmp.lt.s32.totalorder %s26, 1
        %s305 = scalar_select %p304, %s26, 1
        %p306 = scmp.lt.s32.totalorder %s303, 1
        %s307 = scalar_select %p306, %s303, 1
        %s308 = smul.addr %s305, 2
        %s309 = sadd.s32 %s307, %s308
        %s310 = smul.addr %s309, 4
        %s311 = scalar_lea.vmem %s3, %s310
        %p312 = pneg %p169
        %p313 = pneg %p166
        %s314 = smul.u32 2, %s27
        %p315 = scmp.lt.s32.totalorder %s26, 1
        %s316 = scalar_select %p315, %s26, 1
        %p317 = scmp.lt.s32.totalorder %s314, 1
        %s318 = scalar_select %p317, %s314, 1
        %s319 = smul.addr %s316, 18
        %s320 = sadd.s32 %s318, %s319
        %s321 = smul.addr %s320, 4
        %s322 = scalar_lea.vmem %s4, %s321
        %s323 = smul.u32 2, %s27
        %s324 = smul.u32 2, %s27
        %s325 = smul.u32 2, %s27
        %p326 = scmp.lt.s32.totalorder %s26, 1
        %s327 = scalar_select %p326, %s26, 1
        %p328 = scmp.lt.s32.totalorder %s325, 1
        %s329 = scalar_select %p328, %s325, 1
        %s330 = smul.addr %s327, 2
        %s331 = sadd.s32 %s329, %s330
        %s332 = smul.addr %s331, 4
        %s333 = scalar_lea.vmem %s2, %s332
        %s334 = smul.u32 2, %s27
        %s335 = smul.u32 2, %s27
        %p336 = scmp.lt.s32.totalorder %s26, 1
        %s337 = scalar_select %p336, %s26, 1
        %p338 = scmp.lt.s32.totalorder %s335, 1
        %s339 = scalar_select %p338, %s335, 1
        %s340 = smul.addr %s337, 2
        %s341 = sadd.s32 %s339, %s340
        %s342 = smul.addr %s341, 4
        %s343 = scalar_lea.vmem %s3, %s342
        %s344 = smul.u32 2, %s27
        %s345 = smul.u32 2, %s27
        %p346 = scmp.lt.s32.totalorder %s26, 1
        %s347 = scalar_select %p346, %s26, 1
        %p348 = scmp.lt.s32.totalorder %s345, 1
        %s349 = scalar_select %p348, %s345, 1
        %s350 = smul.addr %s347, 18
        %s351 = sadd.s32 %s349, %s350
        %s352 = smul.addr %s351, 4
        %s353 = scalar_lea.vmem %s4, %s352
        %s354 = smul.u32 2, %s27
        %v355 = vld [vmem:[%s260] sm:$0xff]
        %s356 = scalar_lea.vmem %s260, 8 [#allocation2]
        %v357 = vld [vmem:[%s356] sm:$0xff]
        %v358 = vld [vmem:[%s333] sm:$0x77]
        %v359 = vld [vmem:[%s270] sm:$0xff]
        %v360 = vld [vmem:[%s270 + $0x8] sm:$0xff]
        %v361 = vld [vmem:[%s270 + $0x10] sm:$0xff]
        %365 = vst [vmem:[#allocation1] ss:$2 sm:$0xff] %v359
        %v366 = vld.sshfl [vmem:[#allocation1] sm:$0xff pattern:$0x75316420]
        %v367 = vld.sshfl [vmem:[#allocation1 + $0x8] sm:$0xff pattern:$0x75316420]
        %s368 = scalar_lea.vmem [#allocation1], 16
        %369 = vst [vmem:[%s368] ss:$2 sm:$0xff] %v360
        %v370 = vld.sshfl [vmem:[#allocation1 + $0x10] sm:$0xff pattern:$0x75316420]
        %v371 = vld.sshfl [vmem:[#allocation1 + $0x18] sm:$0xff pattern:$0x75316420]
        %s372 = scalar_lea.vmem [#allocation1], 32
        %373 = vst [vmem:[%s372] ss:$2 sm:$0xff] %v361
        %v374 = vld.sshfl [vmem:[#allocation1 + $0x20] sm:$0xff pattern:$0x75316420]
        %v375 = vld.sshfl [vmem:[#allocation1 + $0x28] sm:$0xff pattern:$0x75316420]
        %vm382 = vcmask 1043456
        %v383 = vsel %vm382, %v366, 0.0
        %v384 = vrot.slane %v383, 4
        %v385 = vadd.f32 %v383, %v384
        %v386 = vrot.slane %v385, 2
        %v387 = vadd.f32 %v385, %v386
        %v388 = vrot.slane %v387, 1
        %v389 = vadd.f32 %v387, %v388
        %v390 = vsel %vm382, %v367, 0.0
        %v391 = vrot.slane %v390, 4
        %v392 = vadd.f32 %v390, %v391
        %v393 = vrot.slane %v392, 2
        %v394 = vadd.f32 %v392, %v393
        %v395 = vrot.slane %v394, 1
        %v396 = vadd.f32 %v394, %v395
        %v397 = vsel %vm382, %v370, 0.0
        %v398 = vrot.slane %v397, 4
        %v399 = vadd.f32 %v397, %v398
        %v400 = vrot.slane %v399, 2
        %v401 = vadd.f32 %v399, %v400
        %v402 = vrot.slane %v401, 1
        %v403 = vadd.f32 %v401, %v402
        %v404 = vsel %vm382, %v371, 0.0
        %v405 = vrot.slane %v404, 4
        %v406 = vadd.f32 %v404, %v405
        %v407 = vrot.slane %v406, 2
        %v408 = vadd.f32 %v406, %v407
        %v409 = vrot.slane %v408, 1
        %v410 = vadd.f32 %v408, %v409
        %v411 = vsel %vm382, %v374, 0.0
        %v412 = vrot.slane %v411, 4
        %v413 = vadd.f32 %v411, %v412
        %v414 = vrot.slane %v413, 2
        %v415 = vadd.f32 %v413, %v414
        %v416 = vrot.slane %v415, 1
        %v417 = vadd.f32 %v415, %v416
        %v418 = vsel %vm382, %v375, 0.0
        %v419 = vrot.slane %v418, 4
        %v420 = vadd.f32 %v418, %v419
        %v421 = vrot.slane %v420, 2
        %v422 = vadd.f32 %v420, %v421
        %v423 = vrot.slane %v422, 1
        %v424 = vadd.f32 %v422, %v423
        %v425 = vrcp.pop 4.0
        %v426 = vmul.f32 4.0, %v425
        %v427 = vsub.f32 1.0, %v426
        %v428 = vmul.f32 %v425, %v427
        %v429 = vadd.f32 %v425, %v428
        %vm430 = vweird.f32 %v425
        %v431 = vsel %vm430, %v425, %v429
        %v432 = vmul.f32 %v389, %v431
        %v433 = vmul.f32 %v396, %v431
        %v434 = vmul.f32 %v403, %v431
        %v435 = vmul.f32 %v410, %v431
        %v436 = vmul.f32 %v417, %v431
        %v437 = vmul.f32 %v424, %v431
        %v444 = vrot.slane %v433, 4
        %v445 = vrot.slane %v435, 4
        %v446 = vrot.slane %v437, 4
        %v447 = vsel %vm382, %v432, %v444
        %v448 = vsel %vm382, %v434, %v445
        %v449 = vsel %vm382, %v436, %v446
        %v450 = vrot.slane %v448, 7
        %vm451 = vcmask 1041409
        %v452 = vsel %vm451, %v450, %v447
        %vm453 = vcmask 1045509
        %v454 = vsel %vm453, %v450, %v452
        %v455 = vrot.slane %v449, 6
        %vm456 = vcmask 1042434
        %v457 = vsel %vm456, %v455, %v454
        %vm458 = vcmask 1046534
        %v459 = vsel %vm458, %v455, %v457
        %v461 = vmul.f32 %v358, %v459
        %462 = vst [vmem:[%s343] sm:$0x77] %v461
        %v463 = vand.u32 2147483647, %v355
        %vm464 = vcmp.le.f32.partialorder %v463, 0.7853982
        %vm465 = vcmp.lt.s32.totalorder %v355, 0
        %v466 = vand.u32 %v355, 2139095040
        %v467 = vshrl.u32 %v466, 23
        %v468 = vsub.s32 %v467, 127
        %v469 = vand.u32 2147483647, %v355
        %v470 = vand.u32 %v469, 8388607
        %v471 = vor.u32 %v470, 8388608
        %v472 = vsub.s32 0, %v471
        %v473 = vadd.s32 %v468, 1
        %vm474 = vcmp.gt.s32.totalorder %v473, 0
        %v475 = vsel %vm474, %v473, 0
        %v476 = vshrl.u32 %v475, 5
        %v477 = vand.u32 %v475, 31
        %v478 = vsub.s32 32, %v477
        %v479 = vshrl.u32 683565275, %v478
        %v480 = vshll.u32 683565275, %v477
        %v481 = vshrl.u32 2475754826, %v478
        %v482 = vor.u32 %v480, %v481
        %v483 = vshll.u32 2475754826, %v477
        %v484 = vshrl.u32 2131351028, %v478
        %v485 = vor.u32 %v483, %v484
        %v486 = vshll.u32 2131351028, %v477
        %v487 = vshrl.u32 2102212464, %v478
        %v488 = vor.u32 %v486, %v487
        %v489 = vshll.u32 2102212464, %v477
        %v490 = vshrl.u32 920167782, %v478
        %v491 = vor.u32 %v489, %v490
        %v492 = vshll.u32 920167782, %v477
        %v493 = vshrl.u32 1326507024, %v478
        %v494 = vor.u32 %v492, %v493
        %vm495 = vcmp.lt.s32.totalorder %v476, 1
        %vm496 = vcmp.lt.s32.totalorder %v476, 2
        %vm497 = vcmp.lt.s32.totalorder %v476, 3
        %vm498 = vcmp.lt.s32.totalorder %v476, 4
        %v499 = vsel %vm495, %v479, %v482
        %v500 = vsel %vm498, %v488, 2102212464
        %v501 = vsel %vm497, %v485, %v500
        %v502 = vsel %vm496, %v499, %v501
        %v503 = vsel %vm495, %v482, %v485
        %v504 = vsel %vm498, %v491, 920167782
        %v505 = vsel %vm497, %v488, %v504
        %v506 = vsel %vm496, %v503, %v505
        %v507 = vsel %vm495, %v485, %v488
        %v508 = vsel %vm498, %v494, 1326507024
        %v509 = vsel %vm497, %v491, %v508
        %v510 = vsel %vm496, %v507, %v509
        %v511 = vshll.u32 %v471, 8
        %v512 = vand.u32 %v511, 65535
        %v513 = vshrl.u32 %v511, 16
        %v514 = vand.u32 %v510, 65535
        %v515 = vshrl.u32 %v510, 16
        %v516 = vmul.u32 %v512, %v514
        %v517 = vmul.u32 %v512, %v515
        %v518 = vmul.u32 %v513, %v514
        %v519 = vmul.u32 %v513, %v515
        %v520 = vshll.u32 %v517, 16
        %v521 = vshrl.u32 %v517, 16
        %v522 = vshll.u32 %v518, 16
        %v523 = vshrl.u32 %v518, 16
        %vm524 = vc.u32 %v516, %v520
        %v525 = vsel %vm524, 1, 0
        %v526 = vadd.s32 %v516, %v520
        %v527 = vadd.s32 %v519, %v525
        %vm528 = vc.u32 %v526, %v522
        %v529 = vsel %vm528, 1, 0
        %v530 = vadd.s32 %v526, %v522
        %v531 = vadd.s32 %v527, %v529
        %v532 = vadd.s32 %v531, %v521
        %v533 = vadd.s32 %v532, %v523
        %v534 = vand.u32 %v511, 65535
        %v535 = vshrl.u32 %v511, 16
        %v536 = vand.u32 %v506, 65535
        %v537 = vshrl.u32 %v506, 16
        %v538 = vmul.u32 %v534, %v536
        %v539 = vmul.u32 %v534, %v537
        %v540 = vmul.u32 %v535, %v536
        %v541 = vmul.u32 %v535, %v537
        %v542 = vshll.u32 %v539, 16
        %v543 = vshrl.u32 %v539, 16
        %v544 = vshll.u32 %v540, 16
        %v545 = vshrl.u32 %v540, 16
        %vm546 = vc.u32 %v538, %v542
        %v547 = vsel %vm546, 1, 0
        %v548 = vadd.s32 %v538, %v542
        %v549 = vadd.s32 %v541, %v547
        %vm550 = vc.u32 %v548, %v544
        %v551 = vsel %vm550, 1, 0
        %v552 = vadd.s32 %v548, %v544
        %v553 = vadd.s32 %v549, %v551
        %v554 = vadd.s32 %v553, %v543
        %v555 = vadd.s32 %v554, %v545
        %v556 = vmul.u32 %v511, %v502
        %v557 = vadd.s32 %v533, %v552
        %vm558 = vc.u32 %v533, %v552
        %v559 = vadd.s32 %v555, 1
        %v560 = vsel %vm558, %v559, %v555
        %v561 = vadd.s32 %v556, %v560
        %v562 = vadd.s32 %v561, 536870912
        %v563 = vshrl.u32 %v562, 30
        %v564 = vshll.u32 %v563, 30
        %v565 = vsub.s32 %v561, %v564
        %vm566 = vcmp.lt.s32.totalorder %v565, 0
        %v567 = vsub.s32 0, %v565
        %v568 = vsel %vm566, %v567, %v565
        %v569 = vclz %v568
        %v570 = vsub.s32 %v569, 2
        %vm571 = vcmp.gt.s32.totalorder 0, %v570
        %v572 = vsel %vm571, 0, %v570
        %v573 = vsub.s32 32, %v572
        %v574 = vshll.u32 %v565, %v572
        %v575 = vshrl.u32 %v557, %v573
        %v576 = vor.u32 %v574, %v575
        %v577 = vsub.s32 4294967266, %v572
        %v578 = vadd.s32 %v577, 127
        %v579 = vshll.u32 %v578, 23
        %v580 = vor.u32 4788187, %v579
        %v581 = vand.u32 2147483647, %v580
        %v583 = vcvt.s32.f32 %v576
        %v584 = vmul.f32 %v583, %v581
        %v585 = vxor.u32 %v584, 2147483648
        %v586 = vsel %vm465, %v585, %v584
        %v587 = vsub.s32 4, %v563
        %v588 = vsel %vm465, %v587, %v563
        %v589 = vsel %vm464, %v355, %v586
        %v590 = vsel %vm464, 0, %v588
        %v591 = vmul.f32 %v589, %v589
        %v592 = vmul.f32 %v591, -0.001358992
        %v593 = vadd.f32 %v592, 0.041655596
        %v594 = vmul.f32 %v591, %v593
        %v595 = vadd.f32 %v594, -0.4999988
        %v596 = vmul.f32 %v591, %v595
        %v597 = vadd.f32 1.0, %v596
        %v598 = vmul.f32 %v589, %v589
        %v599 = vmul.f32 %v598, -0.00019511016
        %v600 = vadd.f32 %v599, 0.008332121
        %v601 = vmul.f32 %v598, %v600
        %v602 = vadd.f32 %v601, -0.16666654
        %v603 = vmul.f32 %v598, %v602
        %v604 = vadd.f32 %v603, 1.0
        %v605 = vmul.f32 %v604, %v589
        %vm606 = vweird.f32 %v355
        %v607 = vadd.s32 %v590, 3
        %v608 = vand.u32 %v607, 3
        %vm609 = vcmp.lt.s32.totalorder %v608, 2
        %vm610 = vcmp.eq.s32.totalorder %v608, 0
        %v611 = vxor.u32 %v605, 2147483648
        %v612 = vsel %vm610, %v597, %v611
        %vm613 = vcmp.eq.s32.totalorder %v608, 2
        %v614 = vxor.u32 %v597, 2147483648
        %v615 = vsel %vm613, %v614, %v605
        %v616 = vsel %vm609, %v612, %v615
        %v617 = vsel %vm606, nan, %v616
        %v618 = vand.u32 2147483647, %v357
        %vm619 = vcmp.le.f32.partialorder %v618, 0.7853982
        %vm620 = vcmp.lt.s32.totalorder %v357, 0
        %v621 = vand.u32 %v357, 2139095040
        %v622 = vshrl.u32 %v621, 23
        %v623 = vsub.s32 %v622, 127
        %v624 = vand.u32 2147483647, %v357
        %v625 = vand.u32 %v624, 8388607
        %v626 = vor.u32 %v625, 8388608
        %v627 = vsub.s32 0, %v626
        %v628 = vadd.s32 %v623, 1
        %vm629 = vcmp.gt.s32.totalorder %v628, 0
        %v630 = vsel %vm629, %v628, 0
        %v631 = vshrl.u32 %v630, 5
        %v632 = vand.u32 %v630, 31
        %v633 = vsub.s32 32, %v632
        %v634 = vshrl.u32 683565275, %v633
        %v635 = vshll.u32 683565275, %v632
        %v636 = vshrl.u32 2475754826, %v633
        %v637 = vor.u32 %v635, %v636
        %v638 = vshll.u32 2475754826, %v632
        %v639 = vshrl.u32 2131351028, %v633
        %v640 = vor.u32 %v638, %v639
        %v641 = vshll.u32 2131351028, %v632
        %v642 = vshrl.u32 2102212464, %v633
        %v643 = vor.u32 %v641, %v642
        %v644 = vshll.u32 2102212464, %v632
        %v645 = vshrl.u32 920167782, %v633
        %v646 = vor.u32 %v644, %v645
        %v647 = vshll.u32 920167782, %v632
        %v648 = vshrl.u32 1326507024, %v633
        %v649 = vor.u32 %v647, %v648
        %vm650 = vcmp.lt.s32.totalorder %v631, 1
        %vm651 = vcmp.lt.s32.totalorder %v631, 2
        %vm652 = vcmp.lt.s32.totalorder %v631, 3
        %vm653 = vcmp.lt.s32.totalorder %v631, 4
        %v654 = vsel %vm650, %v634, %v637
        %v655 = vsel %vm653, %v643, 2102212464
        %v656 = vsel %vm652, %v640, %v655
        %v657 = vsel %vm651, %v654, %v656
        %v658 = vsel %vm650, %v637, %v640
        %v659 = vsel %vm653, %v646, 920167782
        %v660 = vsel %vm652, %v643, %v659
        %v661 = vsel %vm651, %v658, %v660
        %v662 = vsel %vm650, %v640, %v643
        %v663 = vsel %vm653, %v649, 1326507024
        %v664 = vsel %vm652, %v646, %v663
        %v665 = vsel %vm651, %v662, %v664
        %v666 = vshll.u32 %v626, 8
        %v667 = vand.u32 %v666, 65535
        %v668 = vshrl.u32 %v666, 16
        %v669 = vand.u32 %v665, 65535
        %v670 = vshrl.u32 %v665, 16
        %v671 = vmul.u32 %v667, %v669
        %v672 = vmul.u32 %v667, %v670
        %v673 = vmul.u32 %v668, %v669
        %v674 = vmul.u32 %v668, %v670
        %v675 = vshll.u32 %v672, 16
        %v676 = vshrl.u32 %v672, 16
        %v677 = vshll.u32 %v673, 16
        %v678 = vshrl.u32 %v673, 16
        %vm679 = vc.u32 %v671, %v675
        %v680 = vsel %vm679, 1, 0
        %v681 = vadd.s32 %v671, %v675
        %v682 = vadd.s32 %v674, %v680
        %vm683 = vc.u32 %v681, %v677
        %v684 = vsel %vm683, 1, 0
        %v685 = vadd.s32 %v681, %v677
        %v686 = vadd.s32 %v682, %v684
        %v687 = vadd.s32 %v686, %v676
        %v688 = vadd.s32 %v687, %v678
        %v689 = vand.u32 %v666, 65535
        %v690 = vshrl.u32 %v666, 16
        %v691 = vand.u32 %v661, 65535
        %v692 = vshrl.u32 %v661, 16
        %v693 = vmul.u32 %v689, %v691
        %v694 = vmul.u32 %v689, %v692
        %v695 = vmul.u32 %v690, %v691
        %v696 = vmul.u32 %v690, %v692
        %v697 = vshll.u32 %v694, 16
        %v698 = vshrl.u32 %v694, 16
        %v699 = vshll.u32 %v695, 16
        %v700 = vshrl.u32 %v695, 16
        %vm701 = vc.u32 %v693, %v697
        %v702 = vsel %vm701, 1, 0
        %v703 = vadd.s32 %v693, %v697
        %v704 = vadd.s32 %v696, %v702
        %vm705 = vc.u32 %v703, %v699
        %v706 = vsel %vm705, 1, 0
        %v707 = vadd.s32 %v703, %v699
        %v708 = vadd.s32 %v704, %v706
        %v709 = vadd.s32 %v708, %v698
        %v710 = vadd.s32 %v709, %v700
        %v711 = vmul.u32 %v666, %v657
        %v712 = vadd.s32 %v688, %v707
        %vm713 = vc.u32 %v688, %v707
        %v714 = vadd.s32 %v710, 1
        %v715 = vsel %vm713, %v714, %v710
        %v716 = vadd.s32 %v711, %v715
        %v717 = vadd.s32 %v716, 536870912
        %v718 = vshrl.u32 %v717, 30
        %v719 = vshll.u32 %v718, 30
        %v720 = vsub.s32 %v716, %v719
        %vm721 = vcmp.lt.s32.totalorder %v720, 0
        %v722 = vsub.s32 0, %v720
        %v723 = vsel %vm721, %v722, %v720
        %v724 = vclz %v723
        %v725 = vsub.s32 %v724, 2
        %vm726 = vcmp.gt.s32.totalorder 0, %v725
        %v727 = vsel %vm726, 0, %v725
        %v728 = vsub.s32 32, %v727
        %v729 = vshll.u32 %v720, %v727
        %v730 = vshrl.u32 %v712, %v728
        %v731 = vor.u32 %v729, %v730
        %v732 = vsub.s32 4294967266, %v727
        %v733 = vadd.s32 %v732, 127
        %v734 = vshll.u32 %v733, 23
        %v735 = vor.u32 4788187, %v734
        %v736 = vand.u32 2147483647, %v735
        %v738 = vcvt.s32.f32 %v731
        %v739 = vmul.f32 %v738, %v736
        %v740 = vxor.u32 %v739, 2147483648
        %v741 = vsel %vm620, %v740, %v739
        %v742 = vsub.s32 4, %v718
        %v743 = vsel %vm620, %v742, %v718
        %v744 = vsel %vm619, %v357, %v741
        %v745 = vsel %vm619, 0, %v743
        %v746 = vmul.f32 %v744, %v744
        %v747 = vmul.f32 %v746, -0.001358992
        %v748 = vadd.f32 %v747, 0.041655596
        %v749 = vmul.f32 %v746, %v748
        %v750 = vadd.f32 %v749, -0.4999988
        %v751 = vmul.f32 %v746, %v750
        %v752 = vadd.f32 1.0, %v751
        %v753 = vmul.f32 %v744, %v744
        %v754 = vmul.f32 %v753, -0.00019511016
        %v755 = vadd.f32 %v754, 0.008332121
        %v756 = vmul.f32 %v753, %v755
        %v757 = vadd.f32 %v756, -0.16666654
        %v758 = vmul.f32 %v753, %v757
        %v759 = vadd.f32 %v758, 1.0
        %v760 = vmul.f32 %v759, %v744
        %vm761 = vweird.f32 %v357
        %v762 = vand.u32 %v745, 3
        %vm763 = vcmp.lt.s32.totalorder %v762, 2
        %vm764 = vcmp.eq.s32.totalorder %v762, 0
        %v765 = vxor.u32 %v760, 2147483648
        %v766 = vsel %vm764, %v752, %v765
        %vm767 = vcmp.eq.s32.totalorder %v762, 2
        %v768 = vxor.u32 %v752, 2147483648
        %v769 = vsel %vm767, %v768, %v760
        %v770 = vsel %vm763, %v766, %v769
        %v771 = vsel %vm761, nan, %v770
        %v772 = vmul.f32 %v617, %v771
        %v773 = vand.u32 2147483647, %v357
        %vm774 = vcmp.le.f32.partialorder %v773, 0.7853982
        %vm775 = vcmp.lt.s32.totalorder %v357, 0
        %v776 = vand.u32 %v357, 2139095040
        %v777 = vshrl.u32 %v776, 23
        %v778 = vsub.s32 %v777, 127
        %v779 = vand.u32 2147483647, %v357
        %v780 = vand.u32 %v779, 8388607
        %v781 = vor.u32 %v780, 8388608
        %v782 = vsub.s32 0, %v781
        %v783 = vadd.s32 %v778, 1
        %vm784 = vcmp.gt.s32.totalorder %v783, 0
        %v785 = vsel %vm784, %v783, 0
        %v786 = vshrl.u32 %v785, 5
        %v787 = vand.u32 %v785, 31
        %v788 = vsub.s32 32, %v787
        %v789 = vshrl.u32 683565275, %v788
        %v790 = vshll.u32 683565275, %v787
        %v791 = vshrl.u32 2475754826, %v788
        %v792 = vor.u32 %v790, %v791
        %v793 = vshll.u32 2475754826, %v787
        %v794 = vshrl.u32 2131351028, %v788
        %v795 = vor.u32 %v793, %v794
        %v796 = vshll.u32 2131351028, %v787
        %v797 = vshrl.u32 2102212464, %v788
        %v798 = vor.u32 %v796, %v797
        %v799 = vshll.u32 2102212464, %v787
        %v800 = vshrl.u32 920167782, %v788
        %v801 = vor.u32 %v799, %v800
        %v802 = vshll.u32 920167782, %v787
        %v803 = vshrl.u32 1326507024, %v788
        %v804 = vor.u32 %v802, %v803
        %vm805 = vcmp.lt.s32.totalorder %v786, 1
        %vm806 = vcmp.lt.s32.totalorder %v786, 2
        %vm807 = vcmp.lt.s32.totalorder %v786, 3
        %vm808 = vcmp.lt.s32.totalorder %v786, 4
        %v809 = vsel %vm805, %v789, %v792
        %v810 = vsel %vm808, %v798, 2102212464
        %v811 = vsel %vm807, %v795, %v810
        %v812 = vsel %vm806, %v809, %v811
        %v813 = vsel %vm805, %v792, %v795
        %v814 = vsel %vm808, %v801, 920167782
        %v815 = vsel %vm807, %v798, %v814
        %v816 = vsel %vm806, %v813, %v815
        %v817 = vsel %vm805, %v795, %v798
        %v818 = vsel %vm808, %v804, 1326507024
        %v819 = vsel %vm807, %v801, %v818
        %v820 = vsel %vm806, %v817, %v819
        %v821 = vshll.u32 %v781, 8
        %v822 = vand.u32 %v821, 65535
        %v823 = vshrl.u32 %v821, 16
        %v824 = vand.u32 %v820, 65535
        %v825 = vshrl.u32 %v820, 16
        %v826 = vmul.u32 %v822, %v824
        %v827 = vmul.u32 %v822, %v825
        %v828 = vmul.u32 %v823, %v824
        %v829 = vmul.u32 %v823, %v825
        %v830 = vshll.u32 %v827, 16
        %v831 = vshrl.u32 %v827, 16
        %v832 = vshll.u32 %v828, 16
        %v833 = vshrl.u32 %v828, 16
        %vm834 = vc.u32 %v826, %v830
        %v835 = vsel %vm834, 1, 0
        %v836 = vadd.s32 %v826, %v830
        %v837 = vadd.s32 %v829, %v835
        %vm838 = vc.u32 %v836, %v832
        %v839 = vsel %vm838, 1, 0
        %v840 = vadd.s32 %v836, %v832
        %v841 = vadd.s32 %v837, %v839
        %v842 = vadd.s32 %v841, %v831
        %v843 = vadd.s32 %v842, %v833
        %v844 = vand.u32 %v821, 65535
        %v845 = vshrl.u32 %v821, 16
        %v846 = vand.u32 %v816, 65535
        %v847 = vshrl.u32 %v816, 16
        %v848 = vmul.u32 %v844, %v846
        %v849 = vmul.u32 %v844, %v847
        %v850 = vmul.u32 %v845, %v846
        %v851 = vmul.u32 %v845, %v847
        %v852 = vshll.u32 %v849, 16
        %v853 = vshrl.u32 %v849, 16
        %v854 = vshll.u32 %v850, 16
        %v855 = vshrl.u32 %v850, 16
        %vm856 = vc.u32 %v848, %v852
        %v857 = vsel %vm856, 1, 0
        %v858 = vadd.s32 %v848, %v852
        %v859 = vadd.s32 %v851, %v857
        %vm860 = vc.u32 %v858, %v854
        %v861 = vsel %vm860, 1, 0
        %v862 = vadd.s32 %v858, %v854
        %v863 = vadd.s32 %v859, %v861
        %v864 = vadd.s32 %v863, %v853
        %v865 = vadd.s32 %v864, %v855
        %v866 = vmul.u32 %v821, %v812
        %v867 = vadd.s32 %v843, %v862
        %vm868 = vc.u32 %v843, %v862
        %v869 = vadd.s32 %v865, 1
        %v870 = vsel %vm868, %v869, %v865
        %v871 = vadd.s32 %v866, %v870
        %v872 = vadd.s32 %v871, 536870912
        %v873 = vshrl.u32 %v872, 30
        %v874 = vshll.u32 %v873, 30
        %v875 = vsub.s32 %v871, %v874
        %vm876 = vcmp.lt.s32.totalorder %v875, 0
        %v877 = vsub.s32 0, %v875
        %v878 = vsel %vm876, %v877, %v875
        %v879 = vclz %v878
        %v880 = vsub.s32 %v879, 2
        %vm881 = vcmp.gt.s32.totalorder 0, %v880
        %v882 = vsel %vm881, 0, %v880
        %v883 = vsub.s32 32, %v882
        %v884 = vshll.u32 %v875, %v882
        %v885 = vshrl.u32 %v867, %v883
        %v886 = vor.u32 %v884, %v885
        %v887 = vsub.s32 4294967266, %v882
        %v888 = vadd.s32 %v887, 127
        %v889 = vshll.u32 %v888, 23
        %v890 = vor.u32 4788187, %v889
        %v891 = vand.u32 2147483647, %v890
        %v893 = vcvt.s32.f32 %v886
        %v894 = vmul.f32 %v893, %v891
        %v895 = vxor.u32 %v894, 2147483648
        %v896 = vsel %vm775, %v895, %v894
        %v897 = vsub.s32 4, %v873
        %v898 = vsel %vm775, %v897, %v873
        %v899 = vsel %vm774, %v357, %v896
        %v900 = vsel %vm774, 0, %v898
        %v901 = vmul.f32 %v899, %v899
        %v902 = vmul.f32 %v901, -0.001358992
        %v903 = vadd.f32 %v902, 0.041655596
        %v904 = vmul.f32 %v901, %v903
        %v905 = vadd.f32 %v904, -0.4999988
        %v906 = vmul.f32 %v901, %v905
        %v907 = vadd.f32 1.0, %v906
        %v908 = vmul.f32 %v899, %v899
        %v909 = vmul.f32 %v908, -0.00019511016
        %v910 = vadd.f32 %v909, 0.008332121
        %v911 = vmul.f32 %v908, %v910
        %v912 = vadd.f32 %v911, -0.16666654
        %v913 = vmul.f32 %v908, %v912
        %v914 = vadd.f32 %v913, 1.0
        %v915 = vmul.f32 %v914, %v899
        %vm916 = vweird.f32 %v357
        %v917 = vadd.s32 %v900, 3
        %v918 = vand.u32 %v917, 3
        %vm919 = vcmp.lt.s32.totalorder %v918, 2
        %vm920 = vcmp.eq.s32.totalorder %v918, 0
        %v921 = vxor.u32 %v915, 2147483648
        %v922 = vsel %vm920, %v907, %v921
        %vm923 = vcmp.eq.s32.totalorder %v918, 2
        %v924 = vxor.u32 %v907, 2147483648
        %v925 = vsel %vm923, %v924, %v915
        %v926 = vsel %vm919, %v922, %v925
        %v927 = vsel %vm916, nan, %v926
        %v928 = vmul.f32 %v617, %v927
        %v929 = vand.u32 2147483647, %v355
        %vm930 = vcmp.le.f32.partialorder %v929, 0.7853982
        %vm931 = vcmp.lt.s32.totalorder %v355, 0
        %v932 = vand.u32 %v355, 2139095040
        %v933 = vshrl.u32 %v932, 23
        %v934 = vsub.s32 %v933, 127
        %v935 = vand.u32 2147483647, %v355
        %v936 = vand.u32 %v935, 8388607
        %v937 = vor.u32 %v936, 8388608
        %v938 = vsub.s32 0, %v937
        %v939 = vadd.s32 %v934, 1
        %vm940 = vcmp.gt.s32.totalorder %v939, 0
        %v941 = vsel %vm940, %v939, 0
        %v942 = vshrl.u32 %v941, 5
        %v943 = vand.u32 %v941, 31
        %v944 = vsub.s32 32, %v943
        %v945 = vshrl.u32 683565275, %v944
        %v946 = vshll.u32 683565275, %v943
        %v947 = vshrl.u32 2475754826, %v944
        %v948 = vor.u32 %v946, %v947
        %v949 = vshll.u32 2475754826, %v943
        %v950 = vshrl.u32 2131351028, %v944
        %v951 = vor.u32 %v949, %v950
        %v952 = vshll.u32 2131351028, %v943
        %v953 = vshrl.u32 2102212464, %v944
        %v954 = vor.u32 %v952, %v953
        %v955 = vshll.u32 2102212464, %v943
        %v956 = vshrl.u32 920167782, %v944
        %v957 = vor.u32 %v955, %v956
        %v958 = vshll.u32 920167782, %v943
        %v959 = vshrl.u32 1326507024, %v944
        %v960 = vor.u32 %v958, %v959
        %vm961 = vcmp.lt.s32.totalorder %v942, 1
        %vm962 = vcmp.lt.s32.totalorder %v942, 2
        %vm963 = vcmp.lt.s32.totalorder %v942, 3
        %vm964 = vcmp.lt.s32.totalorder %v942, 4
        %v965 = vsel %vm961, %v945, %v948
        %v966 = vsel %vm964, %v954, 2102212464
        %v967 = vsel %vm963, %v951, %v966
        %v968 = vsel %vm962, %v965, %v967
        %v969 = vsel %vm961, %v948, %v951
        %v970 = vsel %vm964, %v957, 920167782
        %v971 = vsel %vm963, %v954, %v970
        %v972 = vsel %vm962, %v969, %v971
        %v973 = vsel %vm961, %v951, %v954
        %v974 = vsel %vm964, %v960, 1326507024
        %v975 = vsel %vm963, %v957, %v974
        %v976 = vsel %vm962, %v973, %v975
        %v977 = vshll.u32 %v937, 8
        %v978 = vand.u32 %v977, 65535
        %v979 = vshrl.u32 %v977, 16
        %v980 = vand.u32 %v976, 65535
        %v981 = vshrl.u32 %v976, 16
        %v982 = vmul.u32 %v978, %v980
        %v983 = vmul.u32 %v978, %v981
        %v984 = vmul.u32 %v979, %v980
        %v985 = vmul.u32 %v979, %v981
        %v986 = vshll.u32 %v983, 16
        %v987 = vshrl.u32 %v983, 16
        %v988 = vshll.u32 %v984, 16
        %v989 = vshrl.u32 %v984, 16
        %vm990 = vc.u32 %v982, %v986
        %v991 = vsel %vm990, 1, 0
        %v992 = vadd.s32 %v982, %v986
        %v993 = vadd.s32 %v985, %v991
        %vm994 = vc.u32 %v992, %v988
        %v995 = vsel %vm994, 1, 0
        %v996 = vadd.s32 %v992, %v988
        %v997 = vadd.s32 %v993, %v995
        %v998 = vadd.s32 %v997, %v987
        %v999 = vadd.s32 %v998, %v989
        %v1000 = vand.u32 %v977, 65535
        %v1001 = vshrl.u32 %v977, 16
        %v1002 = vand.u32 %v972, 65535
        %v1003 = vshrl.u32 %v972, 16
        %v1004 = vmul.u32 %v1000, %v1002
        %v1005 = vmul.u32 %v1000, %v1003
        %v1006 = vmul.u32 %v1001, %v1002
        %v1007 = vmul.u32 %v1001, %v1003
        %v1008 = vshll.u32 %v1005, 16
        %v1009 = vshrl.u32 %v1005, 16
        %v1010 = vshll.u32 %v1006, 16
        %v1011 = vshrl.u32 %v1006, 16
        %vm1012 = vc.u32 %v1004, %v1008
        %v1013 = vsel %vm1012, 1, 0
        %v1014 = vadd.s32 %v1004, %v1008
        %v1015 = vadd.s32 %v1007, %v1013
        %vm1016 = vc.u32 %v1014, %v1010
        %v1017 = vsel %vm1016, 1, 0
        %v1018 = vadd.s32 %v1014, %v1010
        %v1019 = vadd.s32 %v1015, %v1017
        %v1020 = vadd.s32 %v1019, %v1009
        %v1021 = vadd.s32 %v1020, %v1011
        %v1022 = vmul.u32 %v977, %v968
        %v1023 = vadd.s32 %v999, %v1018
        %vm1024 = vc.u32 %v999, %v1018
        %v1025 = vadd.s32 %v1021, 1
        %v1026 = vsel %vm1024, %v1025, %v1021
        %v1027 = vadd.s32 %v1022, %v1026
        %v1028 = vadd.s32 %v1027, 536870912
        %v1029 = vshrl.u32 %v1028, 30
        %v1030 = vshll.u32 %v1029, 30
        %v1031 = vsub.s32 %v1027, %v1030
        %vm1032 = vcmp.lt.s32.totalorder %v1031, 0
        %v1033 = vsub.s32 0, %v1031
        %v1034 = vsel %vm1032, %v1033, %v1031
        %v1035 = vclz %v1034
        %v1036 = vsub.s32 %v1035, 2
        %vm1037 = vcmp.gt.s32.totalorder 0, %v1036
        %v1038 = vsel %vm1037, 0, %v1036
        %v1039 = vsub.s32 32, %v1038
        %v1040 = vshll.u32 %v1031, %v1038
        %v1041 = vshrl.u32 %v1023, %v1039
        %v1042 = vor.u32 %v1040, %v1041
        %v1043 = vsub.s32 4294967266, %v1038
        %v1044 = vadd.s32 %v1043, 127
        %v1045 = vshll.u32 %v1044, 23
        %v1046 = vor.u32 4788187, %v1045
        %v1047 = vand.u32 2147483647, %v1046
        %v1049 = vcvt.s32.f32 %v1042
        %v1050 = vmul.f32 %v1049, %v1047
        %v1051 = vxor.u32 %v1050, 2147483648
        %v1052 = vsel %vm931, %v1051, %v1050
        %v1053 = vsub.s32 4, %v1029
        %v1054 = vsel %vm931, %v1053, %v1029
        %v1055 = vsel %vm930, %v355, %v1052
        %v1056 = vsel %vm930, 0, %v1054
        %v1057 = vmul.f32 %v1055, %v1055
        %v1058 = vmul.f32 %v1057, -0.001358992
        %v1059 = vadd.f32 %v1058, 0.041655596
        %v1060 = vmul.f32 %v1057, %v1059
        %v1061 = vadd.f32 %v1060, -0.4999988
        %v1062 = vmul.f32 %v1057, %v1061
        %v1063 = vadd.f32 1.0, %v1062
        %v1064 = vmul.f32 %v1055, %v1055
        %v1065 = vmul.f32 %v1064, -0.00019511016
        %v1066 = vadd.f32 %v1065, 0.008332121
        %v1067 = vmul.f32 %v1064, %v1066
        %v1068 = vadd.f32 %v1067, -0.16666654
        %v1069 = vmul.f32 %v1064, %v1068
        %v1070 = vadd.f32 %v1069, 1.0
        %v1071 = vmul.f32 %v1070, %v1055
        %vm1072 = vweird.f32 %v355
        %v1073 = vand.u32 %v1056, 3
        %vm1074 = vcmp.lt.s32.totalorder %v1073, 2
        %vm1075 = vcmp.eq.s32.totalorder %v1073, 0
        %v1076 = vxor.u32 %v1071, 2147483648
        %v1077 = vsel %vm1075, %v1063, %v1076
        %vm1078 = vcmp.eq.s32.totalorder %v1073, 2
        %v1079 = vxor.u32 %v1063, 2147483648
        %v1080 = vsel %vm1078, %v1079, %v1071
        %v1081 = vsel %vm1074, %v1077, %v1080
        %v1082 = vsel %vm1072, nan, %v1081
        %v1083 = vmul.f32 %v358, 0.2820948
        %1084 = vst [vmem:[%s353] sm:$0x77] %v1083
        %1086 = vst [vmem:[#allocation1] ss:$2 sm:$0xff] %v928
        %v1087 = vld.sshfl [vmem:[#allocation1] sm:$0xff pattern:$0x75316420]
        %v1088 = vld.sshfl [vmem:[#allocation1 + $0x8] sm:$0xff pattern:$0x75316420]
        %v1091 = vsel %vm382, %v1087, 0.0
        %v1092 = vrot.slane %v1091, 4
        %v1093 = vadd.f32 %v1091, %v1092
        %v1094 = vrot.slane %v1093, 2
        %v1095 = vadd.f32 %v1093, %v1094
        %v1096 = vrot.slane %v1095, 1
        %v1097 = vadd.f32 %v1095, %v1096
        %v1098 = vsel %vm382, %v1088, 0.0
        %v1099 = vrot.slane %v1098, 4
        %v1100 = vadd.f32 %v1098, %v1099
        %v1101 = vrot.slane %v1100, 2
        %v1102 = vadd.f32 %v1100, %v1101
        %v1103 = vrot.slane %v1102, 1
        %v1104 = vadd.f32 %v1102, %v1103
        %v1105 = vmul.f32 %v1097, 0.25
        %v1106 = vmul.f32 %v1104, 0.25
        %v1107 = vmul.f32 %v1105, 0.48860252
        %v1108 = vmul.f32 %v1106, 0.48860252
        %1110 = vst [vmem:[#allocation1] ss:$2 sm:$0xff] %v358
        %v1111 = vld.sshfl [vmem:[#allocation1] sm:$0xff pattern:$0x75316420]
        %v1112 = vld.sshfl [vmem:[#allocation1 + $0x8] sm:$0xff pattern:$0x75316420]
        %v1115 = vmul.f32 %v1107, %v1111
        %v1116 = vmul.f32 %v1108, %v1112
        %v1119 = vrot.slane %v1116, 4
        %v1120 = vsel %vm382, %v1115, %v1119
        %s1122 = scalar_lea.vmem %s353, 8
        %1123 = vst [vmem:[%s1122] sm:$0x77] %v1120
        %1125 = vst [vmem:[#allocation1] ss:$2 sm:$0xff] %v1082
        %v1126 = vld.sshfl [vmem:[#allocation1] sm:$0xff pattern:$0x75316420]
        %v1127 = vld.sshfl [vmem:[#allocation1 + $0x8] sm:$0xff pattern:$0x75316420]
        %v1130 = vsel %vm382, %v1126, 0.0
        %v1131 = vrot.slane %v1130, 4
        %v1132 = vadd.f32 %v1130, %v1131
        %v1133 = vrot.slane %v1132, 2
        %v1134 = vadd.f32 %v1132, %v1133
        %v1135 = vrot.slane %v1134, 1
        %v1136 = vadd.f32 %v1134, %v1135
        %v1137 = vsel %vm382, %v1127, 0.0
        %v1138 = vrot.slane %v1137, 4
        %v1139 = vadd.f32 %v1137, %v1138
        %v1140 = vrot.slane %v1139, 2
        %v1141 = vadd.f32 %v1139, %v1140
        %v1142 = vrot.slane %v1141, 1
        %v1143 = vadd.f32 %v1141, %v1142
        %v1144 = vmul.f32 %v1136, 0.25
        %v1145 = vmul.f32 %v1143, 0.25
        %v1146 = vmul.f32 %v1144, 0.48860252
        %v1147 = vmul.f32 %v1145, 0.48860252
        %1148 = vst [vmem:[#allocation1] ss:$2 sm:$0xff] %v358
        %v1149 = vld.sshfl [vmem:[#allocation1] sm:$0xff pattern:$0x75316420]
        %v1150 = vld.sshfl [vmem:[#allocation1 + $0x8] sm:$0xff pattern:$0x75316420]
        %v1153 = vmul.f32 %v1146, %v1149
        %v1154 = vmul.f32 %v1147, %v1150
        %v1157 = vrot.slane %v1154, 4
        %v1158 = vsel %vm382, %v1153, %v1157
        %s1160 = scalar_lea.vmem %s353, 16
        %1161 = vst [vmem:[%s1160] sm:$0x77] %v1158
        %1163 = vst [vmem:[#allocation1] ss:$2 sm:$0xff] %v772
        %v1164 = vld.sshfl [vmem:[#allocation1] sm:$0xff pattern:$0x75316420]
        %v1165 = vld.sshfl [vmem:[#allocation1 + $0x8] sm:$0xff pattern:$0x75316420]
        %v1168 = vsel %vm382, %v1164, 0.0
        %v1169 = vrot.slane %v1168, 4
        %v1170 = vadd.f32 %v1168, %v1169
        %v1171 = vrot.slane %v1170, 2
        %v1172 = vadd.f32 %v1170, %v1171
        %v1173 = vrot.slane %v1172, 1
        %v1174 = vadd.f32 %v1172, %v1173
        %v1175 = vsel %vm382, %v1165, 0.0
        %v1176 = vrot.slane %v1175, 4
        %v1177 = vadd.f32 %v1175, %v1176
        %v1178 = vrot.slane %v1177, 2
        %v1179 = vadd.f32 %v1177, %v1178
        %v1180 = vrot.slane %v1179, 1
        %v1181 = vadd.f32 %v1179, %v1180
        %v1182 = vmul.f32 %v1174, 0.25
        %v1183 = vmul.f32 %v1181, 0.25
        %v1184 = vmul.f32 %v1182, 0.48860252
        %v1185 = vmul.f32 %v1183, 0.48860252
        %1186 = vst [vmem:[#allocation1] ss:$2 sm:$0xff] %v358
        %v1187 = vld.sshfl [vmem:[#allocation1] sm:$0xff pattern:$0x75316420]
        %v1188 = vld.sshfl [vmem:[#allocation1 + $0x8] sm:$0xff pattern:$0x75316420]
        %v1191 = vmul.f32 %v1184, %v1187
        %v1192 = vmul.f32 %v1185, %v1188
        %v1195 = vrot.slane %v1192, 4
        %v1196 = vsel %vm382, %v1191, %v1195
        %s1198 = scalar_lea.vmem %s353, 24
        %1199 = vst [vmem:[%s1198] sm:$0x77] %v1196
        %v1200 = vmul.f32 %v772, %v928
        %1202 = vst [vmem:[#allocation1] ss:$2 sm:$0xff] %v1200
        %v1203 = vld.sshfl [vmem:[#allocation1] sm:$0xff pattern:$0x75316420]
        %v1204 = vld.sshfl [vmem:[#allocation1 + $0x8] sm:$0xff pattern:$0x75316420]
        %v1207 = vsel %vm382, %v1203, 0.0
        %v1208 = vrot.slane %v1207, 4
        %v1209 = vadd.f32 %v1207, %v1208
        %v1210 = vrot.slane %v1209, 2
        %v1211 = vadd.f32 %v1209, %v1210
        %v1212 = vrot.slane %v1211, 1
        %v1213 = vadd.f32 %v1211, %v1212
        %v1214 = vsel %vm382, %v1204, 0.0
        %v1215 = vrot.slane %v1214, 4
        %v1216 = vadd.f32 %v1214, %v1215
        %v1217 = vrot.slane %v1216, 2
        %v1218 = vadd.f32 %v1216, %v1217
        %v1219 = vrot.slane %v1218, 1
        %v1220 = vadd.f32 %v1218, %v1219
        %v1221 = vmul.f32 %v1213, 0.25
        %v1222 = vmul.f32 %v1220, 0.25
        %v1223 = vmul.f32 %v1221, 1.0925485
        %v1224 = vmul.f32 %v1222, 1.0925485
        %1225 = vst [vmem:[#allocation1] ss:$2 sm:$0xff] %v358
        %v1226 = vld.sshfl [vmem:[#allocation1] sm:$0xff pattern:$0x75316420]
        %v1227 = vld.sshfl [vmem:[#allocation1 + $0x8] sm:$0xff pattern:$0x75316420]
        %v1230 = vmul.f32 %v1223, %v1226
        %v1231 = vmul.f32 %v1224, %v1227
        %v1234 = vrot.slane %v1231, 4
        %v1235 = vsel %vm382, %v1230, %v1234
        %s1237 = scalar_lea.vmem %s353, 32
        %1238 = vst [vmem:[%s1237] sm:$0x77] %v1235
        %v1239 = vmul.f32 %v928, %v1082
        %1241 = vst [vmem:[#allocation1] ss:$2 sm:$0xff] %v1239
        %v1242 = vld.sshfl [vmem:[#allocation1] sm:$0xff pattern:$0x75316420]
        %v1243 = vld.sshfl [vmem:[#allocation1 + $0x8] sm:$0xff pattern:$0x75316420]
        %v1246 = vsel %vm382, %v1242, 0.0
        %v1247 = vrot.slane %v1246, 4
        %v1248 = vadd.f32 %v1246, %v1247
        %v1249 = vrot.slane %v1248, 2
        %v1250 = vadd.f32 %v1248, %v1249
        %v1251 = vrot.slane %v1250, 1
        %v1252 = vadd.f32 %v1250, %v1251
        %v1253 = vsel %vm382, %v1243, 0.0
        %v1254 = vrot.slane %v1253, 4
        %v1255 = vadd.f32 %v1253, %v1254
        %v1256 = vrot.slane %v1255, 2
        %v1257 = vadd.f32 %v1255, %v1256
        %v1258 = vrot.slane %v1257, 1
        %v1259 = vadd.f32 %v1257, %v1258
        %v1260 = vmul.f32 %v1252, 0.25
        %v1261 = vmul.f32 %v1259, 0.25
        %v1262 = vmul.f32 %v1260, 1.0925485
        %v1263 = vmul.f32 %v1261, 1.0925485
        %1264 = vst [vmem:[#allocation1] ss:$2 sm:$0xff] %v358
        %v1265 = vld.sshfl [vmem:[#allocation1] sm:$0xff pattern:$0x75316420]
        %v1266 = vld.sshfl [vmem:[#allocation1 + $0x8] sm:$0xff pattern:$0x75316420]
        %v1269 = vmul.f32 %v1262, %v1265
        %v1270 = vmul.f32 %v1263, %v1266
        %v1273 = vrot.slane %v1270, 4
        %v1274 = vsel %vm382, %v1269, %v1273
        %s1276 = scalar_lea.vmem %s353, 40
        %1277 = vst [vmem:[%s1276] sm:$0x77] %v1274
        %v1278 = vmul.f32 %v1082, 2.0
        %v1279 = vmul.f32 %v1278, %v1082
        %v1280 = vmul.f32 %v772, %v772
        %v1281 = vsub.f32 %v1279, %v1280
        %v1282 = vmul.f32 %v928, %v928
        %v1283 = vsub.f32 %v1281, %v1282
        %1285 = vst [vmem:[#allocation1] ss:$2 sm:$0xff] %v1283
        %v1286 = vld.sshfl [vmem:[#allocation1] sm:$0xff pattern:$0x75316420]
        %v1287 = vld.sshfl [vmem:[#allocation1 + $0x8] sm:$0xff pattern:$0x75316420]
        %v1290 = vsel %vm382, %v1286, 0.0
        %v1291 = vrot.slane %v1290, 4
        %v1292 = vadd.f32 %v1290, %v1291
        %v1293 = vrot.slane %v1292, 2
        %v1294 = vadd.f32 %v1292, %v1293
        %v1295 = vrot.slane %v1294, 1
        %v1296 = vadd.f32 %v1294, %v1295
        %v1297 = vsel %vm382, %v1287, 0.0
        %v1298 = vrot.slane %v1297, 4
        %v1299 = vadd.f32 %v1297, %v1298
        %v1300 = vrot.slane %v1299, 2
        %v1301 = vadd.f32 %v1299, %v1300
        %v1302 = vrot.slane %v1301, 1
        %v1303 = vadd.f32 %v1301, %v1302
        %v1304 = vmul.f32 %v1296, 0.25
        %v1305 = vmul.f32 %v1303, 0.25
        %v1306 = vmul.f32 %v1304, 0.31539157
        %v1307 = vmul.f32 %v1305, 0.31539157
        %1308 = vst [vmem:[#allocation1] ss:$2 sm:$0xff] %v358
        %v1309 = vld.sshfl [vmem:[#allocation1] sm:$0xff pattern:$0x75316420]
        %v1310 = vld.sshfl [vmem:[#allocation1 + $0x8] sm:$0xff pattern:$0x75316420]
        %v1313 = vmul.f32 %v1306, %v1309
        %v1314 = vmul.f32 %v1307, %v1310
        %v1317 = vrot.slane %v1314, 4
        %v1318 = vsel %vm382, %v1313, %v1317
        %s1320 = scalar_lea.vmem %s353, 48
        %1321 = vst [vmem:[%s1320] sm:$0x77] %v1318
        %v1322 = vmul.f32 %v1082, %v772
        %1324 = vst [vmem:[#allocation1] ss:$2 sm:$0xff] %v1322
        %v1325 = vld.sshfl [vmem:[#allocation1] sm:$0xff pattern:$0x75316420]
        %v1326 = vld.sshfl [vmem:[#allocation1 + $0x8] sm:$0xff pattern:$0x75316420]
        %v1329 = vsel %vm382, %v1325, 0.0
        %v1330 = vrot.slane %v1329, 4
        %v1331 = vadd.f32 %v1329, %v1330
        %v1332 = vrot.slane %v1331, 2
        %v1333 = vadd.f32 %v1331, %v1332
        %v1334 = vrot.slane %v1333, 1
        %v1335 = vadd.f32 %v1333, %v1334
        %v1336 = vsel %vm382, %v1326, 0.0
        %v1337 = vrot.slane %v1336, 4
        %v1338 = vadd.f32 %v1336, %v1337
        %v1339 = vrot.slane %v1338, 2
        %v1340 = vadd.f32 %v1338, %v1339
        %v1341 = vrot.slane %v1340, 1
        %v1342 = vadd.f32 %v1340, %v1341
        %v1343 = vmul.f32 %v1335, 0.25
        %v1344 = vmul.f32 %v1342, 0.25
        %v1345 = vmul.f32 %v1343, 1.0925485
        %v1346 = vmul.f32 %v1344, 1.0925485
        %1347 = vst [vmem:[#allocation1] ss:$2 sm:$0xff] %v358
        %v1348 = vld.sshfl [vmem:[#allocation1] sm:$0xff pattern:$0x75316420]
        %v1349 = vld.sshfl [vmem:[#allocation1 + $0x8] sm:$0xff pattern:$0x75316420]
        %v1352 = vmul.f32 %v1345, %v1348
        %v1353 = vmul.f32 %v1346, %v1349
        %v1356 = vrot.slane %v1353, 4
        %v1357 = vsel %vm382, %v1352, %v1356
        %s1359 = scalar_lea.vmem %s353, 56
        %1360 = vst [vmem:[%s1359] sm:$0x77] %v1357
        %v1361 = vsub.f32 %v1280, %v1282
        %1363 = vst [vmem:[#allocation1] ss:$2 sm:$0xff] %v1361
        %v1364 = vld.sshfl [vmem:[#allocation1] sm:$0xff pattern:$0x75316420]
        %v1365 = vld.sshfl [vmem:[#allocation1 + $0x8] sm:$0xff pattern:$0x75316420]
        %v1368 = vsel %vm382, %v1364, 0.0
        %v1369 = vrot.slane %v1368, 4
        %v1370 = vadd.f32 %v1368, %v1369
        %v1371 = vrot.slane %v1370, 2
        %v1372 = vadd.f32 %v1370, %v1371
        %v1373 = vrot.slane %v1372, 1
        %v1374 = vadd.f32 %v1372, %v1373
        %v1375 = vsel %vm382, %v1365, 0.0
        %v1376 = vrot.slane %v1375, 4
        %v1377 = vadd.f32 %v1375, %v1376
        %v1378 = vrot.slane %v1377, 2
        %v1379 = vadd.f32 %v1377, %v1378
        %v1380 = vrot.slane %v1379, 1
        %v1381 = vadd.f32 %v1379, %v1380
        %v1382 = vmul.f32 %v1374, 0.25
        %v1383 = vmul.f32 %v1381, 0.25
        %v1384 = vmul.f32 %v1382, 0.54627424
        %v1385 = vmul.f32 %v1383, 0.54627424
        %1386 = vst [vmem:[#allocation1] ss:$2 sm:$0xff] %v358
        %v1387 = vld.sshfl [vmem:[#allocation1] sm:$0xff pattern:$0x75316420]
        %v1388 = vld.sshfl [vmem:[#allocation1 + $0x8] sm:$0xff pattern:$0x75316420]
        %v1391 = vmul.f32 %v1384, %v1387
        %v1392 = vmul.f32 %v1385, %v1388
        %v1395 = vrot.slane %v1392, 4
        %v1396 = vsel %vm382, %v1391, %v1395
        %s1398 = scalar_lea.vmem %s353, 64
        %1399 = vst [vmem:[%s1398] sm:$0x77] %v1396
        %s1400 = smul.u32 2, %s27
        %p1401 = scmp.lt.s32.totalorder %s26, 1
        %s1402 = scalar_select %p1401, %s26, 1
        %p1403 = scmp.lt.s32.totalorder %s1400, 1
        %s1404 = scalar_select %p1403, %s1400, 1
        %s1405 = smul.addr %s1402, 2
        %s1406 = sadd.s32 %s1404, %s1405
        %s1407 = smul.addr %s1406, 4
        %s1408 = scalar_lea.vmem %s3, %s1407
        %s1409 = smul.u32 2, %s27
        %p1410 = scmp.lt.s32.totalorder %s26, 1
        %s1411 = scalar_select %p1410, %s26, 1
        %p1412 = scmp.lt.s32.totalorder %s1409, 1
        %s1413 = scalar_select %p1412, %s1409, 1
        %s1414 = smul.addr %s1411, 18
        %s1415 = sadd.s32 %s1413, %s1414
        %s1416 = smul.addr %s1415, 4
        %s1417 = scalar_lea.vmem %s4, %s1416
        // Predicated region
        $region41: #{tpu_custom_call.1} parent=31 // pred_check
          %p1418 = pneg %p138
        $region42: #{tpu_custom_call.1} parent=31 // pred_check_branch
          %1420 = sbr.rel (%p1418) target = $region44
        $region43: #{tpu_custom_call.1} parent=31 // pred_region
          %s1421 = smul.u32 2, %s27
        $region44: #{tpu_custom_call.1} parent=31 // pred_fallthru
          _
        // Predicated region
        $region45: #{tpu_custom_call.1} parent=31 // pred_check
          %p1422 = pneg %p166
        $region46: #{tpu_custom_call.1} parent=31 // pred_check_branch
          %1424 = sbr.rel (%p1422) target = $region48
        $region47: #{tpu_custom_call.1} parent=31 // pred_region
          %s1425 = smul.u32 2, %s27
        $region48: #{tpu_custom_call.1} parent=31 // pred_fallthru
          _
      $region32: #{tpu_custom_call.1} parent=5 // pred_fallthru
        _
      %p1426 = scmp.le.s32.totalorder 2, %s17
      // Predicated region
      $region49: #{tpu_custom_call.1} parent=5 // pred_check
        %p1427 = pneg %p1426
      $region50: #{tpu_custom_call.1} parent=5 // pred_check_branch
        %1429 = sbr.rel (%p1427) target = $region52
      $region51: #{tpu_custom_call.1} parent=5 // pred_region
        %s1430 = ssub.s32 %s17, 2
        // Predicated region
        $region53: #{tpu_custom_call.1} parent=51 // pred_check
          %p1431 = pneg %p144
        $region54: #{tpu_custom_call.1} parent=51 // pred_check_branch
          %1433 = sbr.rel (%p1431) target = $region56
        $region55: #{tpu_custom_call.1} parent=51 // pred_region
          %s1434 = smul.u32 2, %s29
          %p1435 = scmp.lt.s32.totalorder %s28, 1
          %s1436 = scalar_select %p1435, %s28, 1
          %p1437 = scmp.lt.s32.totalorder %s1434, 1
          %s1438 = scalar_select %p1437, %s1434, 1
          %s1439 = smul.addr %s1436, 2
          %s1440 = sadd.s32 %s1438, %s1439
          %s1441 = smul.addr %s1440, 4
          %s1442 = scalar_lea.vmem %s3, %s1441
        $region56: #{tpu_custom_call.1} parent=51 // pred_fallthru
          _
        // Predicated region
        $region57: #{tpu_custom_call.1} parent=51 // pred_check
          %p1443 = pneg %p172
        $region58: #{tpu_custom_call.1} parent=51 // pred_check_branch
          %1445 = sbr.rel (%p1443) target = $region60
        $region59: #{tpu_custom_call.1} parent=51 // pred_region
          %s1446 = smul.u32 2, %s29
          %p1447 = scmp.lt.s32.totalorder %s28, 1
          %s1448 = scalar_select %p1447, %s28, 1
          %p1449 = scmp.lt.s32.totalorder %s1446, 1
          %s1450 = scalar_select %p1449, %s1446, 1
          %s1451 = smul.addr %s1448, 18
          %s1452 = sadd.s32 %s1450, %s1451
          %s1453 = smul.addr %s1452, 4
          %s1454 = scalar_lea.vmem %s4, %s1453
        $region60: #{tpu_custom_call.1} parent=51 // pred_fallthru
          _
      $region52: #{tpu_custom_call.1} parent=5 // pred_fallthru
        _
    $region6: #{tpu_custom_call.1} parent=1 // loop_footer
      %s21 = sadd.s32 1, %s17
    $region7: #{tpu_custom_call.1} parent=1 // loop_footer_branch
      %16 = sbr.rel target = $region3
    $region8: #{tpu_custom_call.1} parent=1 // loop_exit
      _
    %1455 = vsyncpa [#allocation3], 1
    %s1456 = scalar_lea.sflag [#allocation3], 1
    %1457 = vsyncpa %s1456, 1
    %1458 = vsyncpa [#allocation5], 1
    %s1459 = scalar_lea.sflag [#allocation5], 1
    %1460 = vsyncpa %s1459, 1

</llo_original>
